<compile_context>
chip_gen: v7x
topology: tpu7x:2x2x1
jax: 0.10.0
libtpu: 0.0.40
codegen_flags: <defaults>
</compile_context>

<pallas_src>
import functools

import jax
import jax.numpy as jnp
from jax import lax
from jax.experimental import pallas as pl
from jax.experimental.pallas import tpu as pltpu

LANES = 128
INIT_BASE = 2 ** 28          # unique per-slot sentinel base for acc indices
BIG = 2 ** 30                # tie-break sentinel inside the merge (> INIT_BASE + K)


def _round_up(x: int, m: int) -> int:
    return (x + m - 1) // m * m


def _vmem_budget_bytes() -> int:
    """Per-generation VMEM budget (v5e/v6e: 128 MiB, v7x: 64 MiB physical)."""
    try:
        cap = int(pltpu.get_tpu_info().vmem_capacity_bytes)
    except Exception:
        cap = 64 * 1024 * 1024
    return max(16 * 1024 * 1024, min(cap * 3 // 4, 96 * 1024 * 1024))


def _knn_topk_kernel(q_ref, c_ref, scores_ref, idx_ref, acc_s, acc_i,
                     *, n_valid, k, tile_n, strips_needing_mask):
    """One (b, n) grid step.

    q_ref:      [TB, Dp]  query tile (resident across the n axis)
    c_ref:      [Dp, TN]  corpus tile, feature-major (streamed, double-buffered)
    scores_ref: [TB, K]   f32 output, written once on the last n step
    idx_ref:    [TB, K]   i32 output, written once on the last n step
    acc_s/acc_i:[TB, K]   running top-K accumulator in VMEM
    """
    n = pl.program_id(1)
    n_last = pl.num_programs(1) - 1
    neg_inf = jnp.float32(-jnp.inf)

    @pl.when(n == 0)
    def _init():
        acc_s[...] = jnp.full_like(acc_s, neg_inf)
        # Unique, out-of-range sentinel index per slot: a mid-stream knockout
        # of one -inf placeholder can never clear the other slots at once.
        acc_i[...] = (jnp.int32(INIT_BASE)
                      + lax.broadcasted_iota(jnp.int32, acc_i.shape, 1))

    # MXU: [TB, Dp] x [Dp, TN] -> [TB, TN] f32. Corpus is feature-major, so
    # this is a plain matmul (no transpose of the corpus tile).
    s = jnp.dot(q_ref[...], c_ref[...], preferred_element_type=jnp.float32)

    base_col = n * tile_n                                          # i32 scalar
    lane_iota = lax.broadcasted_iota(jnp.int32, (1, LANES), 1)     # hoisted

    cur_s = acc_s[...]                                             # [TB, K]
    cur_i = acc_i[...]                                             # [TB, K]

    num_strips = tile_n // LANES
    for strip in range(num_strips):
        off = strip * LANES
        ss = s[:, off:off + LANES]            # lane-aligned static slice

        if strip in strips_needing_mask:
            # Only strips that can overlap the padded corpus tail pay for the
            # mask; for non-last tiles the compare is all-true (identity).
            gcol = lane_iota + (base_col + off)
            ss = jnp.where(gcol < n_valid, ss, neg_inf)

        # K argmax/knockout passes over ONE 128-lane strip — stays in vregs.
        # Tie behavior: smallest global index wins (matches lax.top_k; torch
        # does not guarantee any tie order, so this is at least as strict).
        tops_s = []
        tops_i = []
        for _ in range(k):
            m = jnp.max(ss, axis=1, keepdims=True)                 # [TB, 1]
            is_max = ss == m
            li = jnp.min(jnp.where(is_max, lane_iota, jnp.int32(LANES)),
                         axis=1, keepdims=True)                    # local idx
            tops_s.append(m)
            tops_i.append(li)
            ss = jnp.where(lane_iota == li, neg_inf, ss)
        strip_s = jnp.concatenate(tops_s, axis=1)                   # [TB, K]
        strip_i = jnp.concatenate(tops_i, axis=1) + (base_col + off)

        # Merge strip top-K with the running top-K over a tiny [TB, 2K] pool.
        pool_s = jnp.concatenate([cur_s, strip_s], axis=1)
        pool_i = jnp.concatenate([cur_i, strip_i], axis=1)
        new_s = []
        new_i = []
        big = jnp.int32(BIG)
        for _ in range(k):
            m = jnp.max(pool_s, axis=1, keepdims=True)
            is_max = pool_s == m
            sel = jnp.min(jnp.where(is_max, pool_i, big), axis=1, keepdims=True)
            new_s.append(m)
            new_i.append(sel)
            pool_s = jnp.where(pool_i == sel, neg_inf, pool_s)
        cur_s = jnp.concatenate(new_s, axis=1)
        cur_i = jnp.concatenate(new_i, axis=1)

    acc_s[...] = cur_s
    acc_i[...] = cur_i

    # Output write, once per batch tile, on the last corpus tile.
    @pl.when(n == n_last)
    def _emit():
        scores_ref[...] = cur_s
        idx_ref[...] = cur_i


def knn_inner_product(query_embedding, corpus, corpus_id, num_items,
                      *, tile_b=256, tile_n=512,
                      compute_dtype=jnp.bfloat16):
    """Returns (item_ids [B,K] i32, scores [B,K] f32, embeddings [B,K,D]).

    compute_dtype controls the streamed operand precision (bf16 halves HBM
    traffic; pass jnp.float32 for full fidelity vs. an f32 reference).
    """
    B, D = query_embedding.shape
    N, D2 = corpus.shape
    assert D == D2
    K = int(num_items)
    assert 0 < K <= N
    # TODO(synk): support num_items > 128 via multi-strip-wide accumulators.
    assert K <= LANES, "num_items must be <= 128 for the strip-wise top-K"

    d_pad = _round_up(D, LANES)                  # lane (contraction) dim
    esz = jnp.dtype(compute_dtype).itemsize

    # --- batch tiling (sublane multiple of 16 for bf16 packing) -----------
    tb = min(tile_b, _round_up(B, 16))
    b_pad = _round_up(B, tb)
    # Give the "parallel" B axis >= 2 grid steps when possible so both v7x
    # TensorCores get work (harmless one extra step on single-TC chips).
    if b_pad // tb == 1 and b_pad >= 32:
        tb = _round_up(b_pad // 2, 16)
        b_pad = _round_up(B, tb)

    # --- corpus tiling: multiple of 128 lanes, sized to this chip's VMEM ---
    vmem_budget = _vmem_budget_bytes()
    tn = _round_up(min(tile_n, _round_up(N, LANES)), LANES)
    while tn > LANES:
        footprint = (2 * tn * d_pad * esz        # double-buffered corpus block
                     + 2 * tb * d_pad * esz      # double-buffered query block
                     + 4 * tb * tn * 4)          # score tile + strip temporaries
        if footprint <= vmem_budget // 2:
            break
        tn = max(LANES, _round_up(tn // 2, LANES))
    n_pad = _round_up(N, tn)
    assert n_pad < INIT_BASE

    # --- pad / cast inputs -------------------------------------------------
    q = jnp.zeros((b_pad, d_pad), compute_dtype)
    q = q.at[:B, :D].set(query_embedding.astype(compute_dtype))
    # Corpus streamed feature-major so the contraction is (1,)x(0,): no
    # per-tile transpose in the kernel.
    # TODO(synk): for a static corpus, cache this pad+cast+transpose outside
    # the per-query call path (it re-copies the whole corpus every call).
    c = jnp.zeros((d_pad, n_pad), compute_dtype)
    c = c.at[:D, :N].set(corpus.astype(compute_dtype).T)

    # Statically determine which strips of a tile can overlap the padded tail
    # (empty when N % tn == 0 -> no masking anywhere).
    n_tiles = n_pad // tn
    rem = N - (n_tiles - 1) * tn                 # valid columns in the last tile
    strips_needing_mask = tuple(si for si in range(tn // LANES)
                                if si * LANES + LANES > rem)

    kernel = functools.partial(
        _knn_topk_kernel, n_valid=N, k=K, tile_n=tn,
        strips_needing_mask=strips_needing_mask)

    scores, indices = pl.pallas_call(
        kernel,
        grid=(b_pad // tb, n_tiles),
        out_shape=(
            jax.ShapeDtypeStruct((b_pad, K), jnp.float32),
            jax.ShapeDtypeStruct((b_pad, K), jnp.int32),
        ),
        in_specs=[
            pl.BlockSpec((tb, d_pad), lambda b, n: (b, 0)),   # query tile
            pl.BlockSpec((d_pad, tn), lambda b, n: (0, n)),   # streamed corpus tile
        ],
        out_specs=(
            pl.BlockSpec((tb, K), lambda b, n: (b, 0)),
            pl.BlockSpec((tb, K), lambda b, n: (b, 0)),
        ),
        scratch_shapes=[
            pltpu.VMEM((tb, K), jnp.float32),   # running top-K scores
            pltpu.VMEM((tb, K), jnp.int32),     # running top-K global indices
        ],
        compiler_params=pltpu.CompilerParams(
            dimension_semantics=("parallel", "arbitrary"),
            vmem_limit_bytes=vmem_budget,
        ),
    )(q, c)

    scores = scores[:B]
    indices = indices[:B]

    # Glue: gather ids and embeddings of the selected neighbors (plain JAX).
    item_ids = corpus_id[indices]        # [B, K]
    embeddings = corpus[indices]         # [B, K, D]
    return item_ids, scores, embeddings


if __name__ == "__main__":
    key = jax.random.PRNGKey(0)
    k_q, k_c = jax.random.split(key)

    # Small shapes that exercise multi-tile B, multi-tile N / multi-strip
    # tiles, and a padded corpus tail (N % tile_n != 0).
    corpus_size = 200     # N
    embedding_dim = 32    # D
    batch = 20            # B
    num_items = 8         # K

    corpus = jax.random.normal(k_c, (corpus_size, embedding_dim), dtype=jnp.float32)
    corpus_id = jnp.arange(100, 100 + corpus_size, dtype=jnp.int32)
    query = jax.random.normal(k_q, (batch, embedding_dim), dtype=jnp.float32)

    # Pure-JAX reference at the same compute precision (bf16 operands, f32 acc).
    ref_logits = jnp.dot(query.astype(jnp.bfloat16),
                         corpus.astype(jnp.bfloat16).T,
                         preferred_element_type=jnp.float32)
    ref_scores, ref_idx = lax.top_k(ref_logits, num_items)

    # Two tilings: (a) 2 B-tiles x 2 N-tiles (1 strip each, padded last tile);
    # (b) 1 N-tile with 2 strips (second strip partially padded), auto B split.
    for tb, tn in ((16, 128), (32, 256)):
        item_ids, scores, embeddings = knn_inner_product(
            query, corpus, corpus_id, num_items, tile_b=tb, tile_n=tn)
        jax.block_until_ready((item_ids, scores, embeddings))

        assert jnp.allclose(scores, ref_scores, atol=1e-3, rtol=1e-3)
        assert jnp.array_equal(item_ids, corpus_id[ref_idx])
        assert jnp.allclose(embeddings, corpus[ref_idx], atol=1e-6)
        assert item_ids.shape == (batch, num_items)
        assert scores.shape == (batch, num_items)
        assert embeddings.shape == (batch, num_items, embedding_dim)

    print("KERNEL_OK")
</pallas_src>

<mosaic_0001>
module attributes {stable_mosaic.version = 11 : i64} {
  func.func @_knn_topk_kernel(%arg0: i32, %arg1: i32, %arg2: memref<16x128xbf16, #tpu.memory_space<vmem>>, %arg3: memref<128x128xbf16, #tpu.memory_space<vmem>>, %arg4: memref<16x8xf32, #tpu.memory_space<vmem>>, %arg5: memref<16x8xi32, #tpu.memory_space<vmem>>, %arg6: memref<16x8xf32, #tpu.memory_space<vmem>>, %arg7: memref<16x8xi32, #tpu.memory_space<vmem>>) attributes {dimension_semantics = [#tpu.dimension_semantics<parallel>, #tpu.dimension_semantics<arbitrary>], iteration_bounds = array<i64: 2, 2>, scalar_prefetch = 0 : i64, scratch_operands = 2 : i64, tpu.core_type = #tpu.core_type<tc>, window_params = [{transform_indices = @transform_0, window_bounds = array<i64: 16, 128>}, {transform_indices = @transform_1, window_bounds = array<i64: 128, 128>}, {transform_indices = @transform_2, window_bounds = array<i64: 16, 8>}, {transform_indices = @transform_3, window_bounds = array<i64: 16, 8>}]} {
    %c0_i32 = arith.constant 0 : i32
    %0 = arith.cmpi eq, %arg1, %c0_i32 : i32
    %1 = arith.extui %0 : i1 to i32
    %cst = arith.constant 0xFF800000 : f32
    %c0_i32_0 = arith.constant 0 : i32
    %2 = arith.cmpi ne, %1, %c0_i32_0 : i32
    scf.if %2 {
      %240 = vector.broadcast %cst : f32 to vector<16x8xf32>
      %c0_78 = arith.constant 0 : index
      %c0_79 = arith.constant 0 : index
      %241 = vector.load %arg6[%c0_78, %c0_79] : memref<16x8xf32, #tpu.memory_space<vmem>>, vector<16x8xf32>
      tpu.vector_store %arg6[%c0_78, %c0_79], %240 {strides = array<i32>} : memref<16x8xf32, #tpu.memory_space<vmem>>, vector<16x8xf32>,
      %242 = tpu.iota {dimensions = array<i32: 1>} : vector<16x8xi32>
      %c268435456_i32 = arith.constant 268435456 : i32
      %243 = vector.broadcast %c268435456_i32 : i32 to vector<16x8xi32>
      %244 = arith.addi %243, %242 : vector<16x8xi32>
      %c0_80 = arith.constant 0 : index
      %c0_81 = arith.constant 0 : index
      %245 = vector.load %arg7[%c0_80, %c0_81] : memref<16x8xi32, #tpu.memory_space<vmem>>, vector<16x8xi32>
      tpu.vector_store %arg7[%c0_80, %c0_81], %244 {strides = array<i32>} : memref<16x8xi32, #tpu.memory_space<vmem>>, vector<16x8xi32>,
    } else {
    }
    %c0 = arith.constant 0 : index
    %c0_1 = arith.constant 0 : index
    %3 = vector.load %arg2[%c0, %c0_1] : memref<16x128xbf16, #tpu.memory_space<vmem>>, vector<16x128xbf16>
    %c0_2 = arith.constant 0 : index
    %c0_3 = arith.constant 0 : index
    %4 = vector.load %arg3[%c0_2, %c0_3] : memref<128x128xbf16, #tpu.memory_space<vmem>>, vector<128x128xbf16>
    %cst_4 = arith.constant dense<0.000000e+00> : vector<16x128xf32>
    %5 = tpu.matmul %3, %4, %cst_4 {dimension_numbers = #tpu.dot_dimension_numbers<[1], [0], [0], [1], [0, 0, 1, 1], [], []>} : vector<16x128xbf16>, vector<128x128xbf16>, vector<16x128xf32> -> vector<16x128xf32>
    %c128_i32 = arith.constant 128 : i32
    %6 = arith.muli %arg1, %c128_i32 : i32
    %7 = tpu.iota {dimensions = array<i32: 1>} : vector<1x128xi32>
    %c0_5 = arith.constant 0 : index
    %c0_6 = arith.constant 0 : index
    %8 = vector.load %arg6[%c0_5, %c0_6] : memref<16x8xf32, #tpu.memory_space<vmem>>, vector<16x8xf32>
    %c0_7 = arith.constant 0 : index
    %c0_8 = arith.constant 0 : index
    %9 = vector.load %arg7[%c0_7, %c0_8] : memref<16x8xi32, #tpu.memory_space<vmem>>, vector<16x8xi32>
    %c0_i32_9 = arith.constant 0 : i32
    %10 = arith.addi %6, %c0_i32_9 : i32
    %11 = vector.broadcast %10 : i32 to vector<1x128xi32>
    %12 = arith.addi %7, %11 : vector<1x128xi32>
    %c200_i32 = arith.constant 200 : i32
    %13 = vector.broadcast %c200_i32 : i32 to vector<1x128xi32>
    %14 = arith.cmpi slt, %12, %13 : vector<1x128xi32>
    %cst_10 = arith.constant 0xFF800000 : f32
    %15 = vector.shape_cast %14 : vector<1x128xi1> to vector<1x128xi1>
    %16 = vector.broadcast %15 : vector<1x128xi1> to vector<16x128xi1>
    %17 = vector.broadcast %cst_10 : f32 to vector<16x128xf32>
    %18 = arith.select %16, %5, %17 : vector<16x128xi1>, vector<16x128xf32>
    %cst_11 = arith.constant dense<0xFF800000> : vector<16xf32>
    %19 = vector.multi_reduction <maximumf>, %18, %cst_11 [1] : vector<16x128xf32> to vector<16xf32>
    %20 = vector.shape_cast %19 : vector<16xf32> to vector<16x1xf32>
    %21 = vector.broadcast %20 : vector<16x1xf32> to vector<16x128xf32>
    %22 = arith.cmpf oeq, %18, %21 : vector<16x128xf32>
    %c128_i32_12 = arith.constant 128 : i32
    %23 = vector.shape_cast %7 : vector<1x128xi32> to vector<1x128xi32>
    %24 = vector.broadcast %23 : vector<1x128xi32> to vector<16x128xi32>
    %25 = vector.broadcast %c128_i32_12 : i32 to vector<16x128xi32>
    %26 = arith.select %22, %24, %25 : vector<16x128xi1>, vector<16x128xi32>
    %cst_13 = arith.constant dense<2147483647> : vector<16xi32>
    %27 = vector.multi_reduction <minsi>, %26, %cst_13 [1] : vector<16x128xi32> to vector<16xi32>
    %28 = vector.shape_cast %27 : vector<16xi32> to vector<16x1xi32>
    %29 = vector.broadcast %7 : vector<1x128xi32> to vector<16x128xi32>
    %30 = vector.broadcast %28 : vector<16x1xi32> to vector<16x128xi32>
    %31 = arith.cmpi eq, %29, %30 : vector<16x128xi32>
    %cst_14 = arith.constant 0xFF800000 : f32
    %32 = vector.broadcast %cst_14 : f32 to vector<16x128xf32>
    %33 = arith.select %31, %32, %18 : vector<16x128xi1>, vector<16x128xf32>
    %cst_15 = arith.constant dense<0xFF800000> : vector<16xf32>
    %34 = vector.multi_reduction <maximumf>, %33, %cst_15 [1] : vector<16x128xf32> to vector<16xf32>
    %35 = vector.shape_cast %34 : vector<16xf32> to vector<16x1xf32>
    %36 = vector.broadcast %35 : vector<16x1xf32> to vector<16x128xf32>
    %37 = arith.cmpf oeq, %33, %36 : vector<16x128xf32>
    %c128_i32_16 = arith.constant 128 : i32
    %38 = vector.shape_cast %7 : vector<1x128xi32> to vector<1x128xi32>
    %39 = vector.broadcast %38 : vector<1x128xi32> to vector<16x128xi32>
    %40 = vector.broadcast %c128_i32_16 : i32 to vector<16x128xi32>
    %41 = arith.select %37, %39, %40 : vector<16x128xi1>, vector<16x128xi32>
    %cst_17 = arith.constant dense<2147483647> : vector<16xi32>
    %42 = vector.multi_reduction <minsi>, %41, %cst_17 [1] : vector<16x128xi32> to vector<16xi32>
    %43 = vector.shape_cast %42 : vector<16xi32> to vector<16x1xi32>
    %44 = vector.broadcast %7 : vector<1x128xi32> to vector<16x128xi32>
    %45 = vector.broadcast %43 : vector<16x1xi32> to vector<16x128xi32>
    %46 = arith.cmpi eq, %44, %45 : vector<16x128xi32>
    %cst_18 = arith.constant 0xFF800000 : f32
    %47 = vector.broadcast %cst_18 : f32 to vector<16x128xf32>
    %48 = arith.select %46, %47, %33 : vector<16x128xi1>, vector<16x128xf32>
    %cst_19 = arith.constant dense<0xFF800000> : vector<16xf32>
    %49 = vector.multi_reduction <maximumf>, %48, %cst_19 [1] : vector<16x128xf32> to vector<16xf32>
    %50 = vector.shape_cast %49 : vector<16xf32> to vector<16x1xf32>
    %51 = vector.broadcast %50 : vector<16x1xf32> to vector<16x128xf32>
    %52 = arith.cmpf oeq, %48, %51 : vector<16x128xf32>
    %c128_i32_20 = arith.constant 128 : i32
    %53 = vector.shape_cast %7 : vector<1x128xi32> to vector<1x128xi32>
    %54 = vector.broadcast %53 : vector<1x128xi32> to vector<16x128xi32>
    %55 = vector.broadcast %c128_i32_20 : i32 to vector<16x128xi32>
    %56 = arith.select %52, %54, %55 : vector<16x128xi1>, vector<16x128xi32>
    %cst_21 = arith.constant dense<2147483647> : vector<16xi32>
    %57 = vector.multi_reduction <minsi>, %56, %cst_21 [1] : vector<16x128xi32> to vector<16xi32>
    %58 = vector.shape_cast %57 : vector<16xi32> to vector<16x1xi32>
    %59 = vector.broadcast %7 : vector<1x128xi32> to vector<16x128xi32>
    %60 = vector.broadcast %58 : vector<16x1xi32> to vector<16x128xi32>
    %61 = arith.cmpi eq, %59, %60 : vector<16x128xi32>
    %cst_22 = arith.constant 0xFF800000 : f32
    %62 = vector.broadcast %cst_22 : f32 to vector<16x128xf32>
    %63 = arith.select %61, %62, %48 : vector<16x128xi1>, vector<16x128xf32>
    %cst_23 = arith.constant dense<0xFF800000> : vector<16xf32>
    %64 = vector.multi_reduction <maximumf>, %63, %cst_23 [1] : vector<16x128xf32> to vector<16xf32>
    %65 = vector.shape_cast %64 : vector<16xf32> to vector<16x1xf32>
    %66 = vector.broadcast %65 : vector<16x1xf32> to vector<16x128xf32>
    %67 = arith.cmpf oeq, %63, %66 : vector<16x128xf32>
    %c128_i32_24 = arith.constant 128 : i32
    %68 = vector.shape_cast %7 : vector<1x128xi32> to vector<1x128xi32>
    %69 = vector.broadcast %68 : vector<1x128xi32> to vector<16x128xi32>
    %70 = vector.broadcast %c128_i32_24 : i32 to vector<16x128xi32>
    %71 = arith.select %67, %69, %70 : vector<16x128xi1>, vector<16x128xi32>
    %cst_25 = arith.constant dense<2147483647> : vector<16xi32>
    %72 = vector.multi_reduction <minsi>, %71, %cst_25 [1] : vector<16x128xi32> to vector<16xi32>
    %73 = vector.shape_cast %72 : vector<16xi32> to vector<16x1xi32>
    %74 = vector.broadcast %7 : vector<1x128xi32> to vector<16x128xi32>
    %75 = vector.broadcast %73 : vector<16x1xi32> to vector<16x128xi32>
    %76 = arith.cmpi eq, %74, %75 : vector<16x128xi32>
    %cst_26 = arith.constant 0xFF800000 : f32
    %77 = vector.broadcast %cst_26 : f32 to vector<16x128xf32>
    %78 = arith.select %76, %77, %63 : vector<16x128xi1>, vector<16x128xf32>
    %cst_27 = arith.constant dense<0xFF800000> : vector<16xf32>
    %79 = vector.multi_reduction <maximumf>, %78, %cst_27 [1] : vector<16x128xf32> to vector<16xf32>
    %80 = vector.shape_cast %79 : vector<16xf32> to vector<16x1xf32>
    %81 = vector.broadcast %80 : vector<16x1xf32> to vector<16x128xf32>
    %82 = arith.cmpf oeq, %78, %81 : vector<16x128xf32>
    %c128_i32_28 = arith.constant 128 : i32
    %83 = vector.shape_cast %7 : vector<1x128xi32> to vector<1x128xi32>
    %84 = vector.broadcast %83 : vector<1x128xi32> to vector<16x128xi32>
    %85 = vector.broadcast %c128_i32_28 : i32 to vector<16x128xi32>
    %86 = arith.select %82, %84, %85 : vector<16x128xi1>, vector<16x128xi32>
    %cst_29 = arith.constant dense<2147483647> : vector<16xi32>
    %87 = vector.multi_reduction <minsi>, %86, %cst_29 [1] : vector<16x128xi32> to vector<16xi32>
    %88 = vector.shape_cast %87 : vector<16xi32> to vector<16x1xi32>
    %89 = vector.broadcast %7 : vector<1x128xi32> to vector<16x128xi32>
    %90 = vector.broadcast %88 : vector<16x1xi32> to vector<16x128xi32>
    %91 = arith.cmpi eq, %89, %90 : vector<16x128xi32>
    %cst_30 = arith.constant 0xFF800000 : f32
    %92 = vector.broadcast %cst_30 : f32 to vector<16x128xf32>
    %93 = arith.select %91, %92, %78 : vector<16x128xi1>, vector<16x128xf32>
    %cst_31 = arith.constant dense<0xFF800000> : vector<16xf32>
    %94 = vector.multi_reduction <maximumf>, %93, %cst_31 [1] : vector<16x128xf32> to vector<16xf32>
    %95 = vector.shape_cast %94 : vector<16xf32> to vector<16x1xf32>
    %96 = vector.broadcast %95 : vector<16x1xf32> to vector<16x128xf32>
    %97 = arith.cmpf oeq, %93, %96 : vector<16x128xf32>
    %c128_i32_32 = arith.constant 128 : i32
    %98 = vector.shape_cast %7 : vector<1x128xi32> to vector<1x128xi32>
    %99 = vector.broadcast %98 : vector<1x128xi32> to vector<16x128xi32>
    %100 = vector.broadcast %c128_i32_32 : i32 to vector<16x128xi32>
    %101 = arith.select %97, %99, %100 : vector<16x128xi1>, vector<16x128xi32>
    %cst_33 = arith.constant dense<2147483647> : vector<16xi32>
    %102 = vector.multi_reduction <minsi>, %101, %cst_33 [1] : vector<16x128xi32> to vector<16xi32>
    %103 = vector.shape_cast %102 : vector<16xi32> to vector<16x1xi32>
    %104 = vector.broadcast %7 : vector<1x128xi32> to vector<16x128xi32>
    %105 = vector.broadcast %103 : vector<16x1xi32> to vector<16x128xi32>
    %106 = arith.cmpi eq, %104, %105 : vector<16x128xi32>
    %cst_34 = arith.constant 0xFF800000 : f32
    %107 = vector.broadcast %cst_34 : f32 to vector<16x128xf32>
    %108 = arith.select %106, %107, %93 : vector<16x128xi1>, vector<16x128xf32>
    %cst_35 = arith.constant dense<0xFF800000> : vector<16xf32>
    %109 = vector.multi_reduction <maximumf>, %108, %cst_35 [1] : vector<16x128xf32> to vector<16xf32>
    %110 = vector.shape_cast %109 : vector<16xf32> to vector<16x1xf32>
    %111 = vector.broadcast %110 : vector<16x1xf32> to vector<16x128xf32>
    %112 = arith.cmpf oeq, %108, %111 : vector<16x128xf32>
    %c128_i32_36 = arith.constant 128 : i32
    %113 = vector.shape_cast %7 : vector<1x128xi32> to vector<1x128xi32>
    %114 = vector.broadcast %113 : vector<1x128xi32> to vector<16x128xi32>
    %115 = vector.broadcast %c128_i32_36 : i32 to vector<16x128xi32>
    %116 = arith.select %112, %114, %115 : vector<16x128xi1>, vector<16x128xi32>
    %cst_37 = arith.constant dense<2147483647> : vector<16xi32>
    %117 = vector.multi_reduction <minsi>, %116, %cst_37 [1] : vector<16x128xi32> to vector<16xi32>
    %118 = vector.shape_cast %117 : vector<16xi32> to vector<16x1xi32>
    %119 = vector.broadcast %7 : vector<1x128xi32> to vector<16x128xi32>
    %120 = vector.broadcast %118 : vector<16x1xi32> to vector<16x128xi32>
    %121 = arith.cmpi eq, %119, %120 : vector<16x128xi32>
    %cst_38 = arith.constant 0xFF800000 : f32
    %122 = vector.broadcast %cst_38 : f32 to vector<16x128xf32>
    %123 = arith.select %121, %122, %108 : vector<16x128xi1>, vector<16x128xf32>
    %cst_39 = arith.constant dense<0xFF800000> : vector<16xf32>
    %124 = vector.multi_reduction <maximumf>, %123, %cst_39 [1] : vector<16x128xf32> to vector<16xf32>
    %125 = vector.shape_cast %124 : vector<16xf32> to vector<16x1xf32>
    %126 = vector.broadcast %125 : vector<16x1xf32> to vector<16x128xf32>
    %127 = arith.cmpf oeq, %123, %126 : vector<16x128xf32>
    %c128_i32_40 = arith.constant 128 : i32
    %128 = vector.shape_cast %7 : vector<1x128xi32> to vector<1x128xi32>
    %129 = vector.broadcast %128 : vector<1x128xi32> to vector<16x128xi32>
    %130 = vector.broadcast %c128_i32_40 : i32 to vector<16x128xi32>
    %131 = arith.select %127, %129, %130 : vector<16x128xi1>, vector<16x128xi32>
    %cst_41 = arith.constant dense<2147483647> : vector<16xi32>
    %132 = vector.multi_reduction <minsi>, %131, %cst_41 [1] : vector<16x128xi32> to vector<16xi32>
    %133 = vector.shape_cast %132 : vector<16xi32> to vector<16x1xi32>
    %134 = tpu.concatenate %20, %35, %50, %65, %80, %95, %110, %125 in 1 : vector<16x1xf32>, vector<16x1xf32>, vector<16x1xf32>, vector<16x1xf32>, vector<16x1xf32>, vector<16x1xf32>, vector<16x1xf32>, vector<16x1xf32> -> vector<16x8xf32>
    %135 = tpu.concatenate %28, %43, %58, %73, %88, %103, %118, %133 in 1 : vector<16x1xi32>, vector<16x1xi32>, vector<16x1xi32>, vector<16x1xi32>, vector<16x1xi32>, vector<16x1xi32>, vector<16x1xi32>, vector<16x1xi32> -> vector<16x8xi32>
    %c0_i32_42 = arith.constant 0 : i32
    %136 = arith.addi %6, %c0_i32_42 : i32
    %137 = vector.broadcast %136 : i32 to vector<16x8xi32>
    %138 = arith.addi %135, %137 : vector<16x8xi32>
    %139 = tpu.concatenate %8, %134 in 1 : vector<16x8xf32>, vector<16x8xf32> -> vector<16x16xf32>
    %140 = tpu.concatenate %9, %138 in 1 : vector<16x8xi32>, vector<16x8xi32> -> vector<16x16xi32>
    %cst_43 = arith.constant dense<0xFF800000> : vector<16xf32>
    %141 = vector.multi_reduction <maximumf>, %139, %cst_43 [1] : vector<16x16xf32> to vector<16xf32>
    %142 = vector.shape_cast %141 : vector<16xf32> to vector<16x1xf32>
    %143 = vector.broadcast %142 : vector<16x1xf32> to vector<16x16xf32>
    %144 = arith.cmpf oeq, %139, %143 : vector<16x16xf32>
    %c1073741824_i32 = arith.constant 1073741824 : i32
    %145 = vector.broadcast %c1073741824_i32 : i32 to vector<16x16xi32>
    %146 = arith.select %144, %140, %145 : vector<16x16xi1>, vector<16x16xi32>
    %cst_44 = arith.constant dense<2147483647> : vector<16xi32>
    %147 = vector.multi_reduction <minsi>, %146, %cst_44 [1] : vector<16x16xi32> to vector<16xi32>
    %148 = vector.shape_cast %147 : vector<16xi32> to vector<16x1xi32>
    %149 = vector.broadcast %148 : vector<16x1xi32> to vector<16x16xi32>
    %150 = arith.cmpi eq, %140, %149 : vector<16x16xi32>
    %cst_45 = arith.constant 0xFF800000 : f32
    %151 = vector.broadcast %cst_45 : f32 to vector<16x16xf32>
    %152 = arith.select %150, %151, %139 : vector<16x16xi1>, vector<16x16xf32>
    %cst_46 = arith.constant dense<0xFF800000> : vector<16xf32>
    %153 = vector.multi_reduction <maximumf>, %152, %cst_46 [1] : vector<16x16xf32> to vector<16xf32>
    %154 = vector.shape_cast %153 : vector<16xf32> to vector<16x1xf32>
    %155 = vector.broadcast %154 : vector<16x1xf32> to vector<16x16xf32>
    %156 = arith.cmpf oeq, %152, %155 : vector<16x16xf32>
    %c1073741824_i32_47 = arith.constant 1073741824 : i32
    %157 = vector.broadcast %c1073741824_i32_47 : i32 to vector<16x16xi32>
    %158 = arith.select %156, %140, %157 : vector<16x16xi1>, vector<16x16xi32>
    %cst_48 = arith.constant dense<2147483647> : vector<16xi32>
    %159 = vector.multi_reduction <minsi>, %158, %cst_48 [1] : vector<16x16xi32> to vector<16xi32>
    %160 = vector.shape_cast %159 : vector<16xi32> to vector<16x1xi32>
    %161 = vector.broadcast %160 : vector<16x1xi32> to vector<16x16xi32>
    %162 = arith.cmpi eq, %140, %161 : vector<16x16xi32>
    %cst_49 = arith.constant 0xFF800000 : f32
    %163 = vector.broadcast %cst_49 : f32 to vector<16x16xf32>
    %164 = arith.select %162, %163, %152 : vector<16x16xi1>, vector<16x16xf32>
    %cst_50 = arith.constant dense<0xFF800000> : vector<16xf32>
    %165 = vector.multi_reduction <maximumf>, %164, %cst_50 [1] : vector<16x16xf32> to vector<16xf32>
    %166 = vector.shape_cast %165 : vector<16xf32> to vector<16x1xf32>
    %167 = vector.broadcast %166 : vector<16x1xf32> to vector<16x16xf32>
    %168 = arith.cmpf oeq, %164, %167 : vector<16x16xf32>
    %c1073741824_i32_51 = arith.constant 1073741824 : i32
    %169 = vector.broadcast %c1073741824_i32_51 : i32 to vector<16x16xi32>
    %170 = arith.select %168, %140, %169 : vector<16x16xi1>, vector<16x16xi32>
    %cst_52 = arith.constant dense<2147483647> : vector<16xi32>
    %171 = vector.multi_reduction <minsi>, %170, %cst_52 [1] : vector<16x16xi32> to vector<16xi32>
    %172 = vector.shape_cast %171 : vector<16xi32> to vector<16x1xi32>
    %173 = vector.broadcast %172 : vector<16x1xi32> to vector<16x16xi32>
    %174 = arith.cmpi eq, %140, %173 : vector<16x16xi32>
    %cst_53 = arith.constant 0xFF800000 : f32
    %175 = vector.broadcast %cst_53 : f32 to vector<16x16xf32>
    %176 = arith.select %174, %175, %164 : vector<16x16xi1>, vector<16x16xf32>
    %cst_54 = arith.constant dense<0xFF800000> : vector<16xf32>
    %177 = vector.multi_reduction <maximumf>, %176, %cst_54 [1] : vector<16x16xf32> to vector<16xf32>
    %178 = vector.shape_cast %177 : vector<16xf32> to vector<16x1xf32>
    %179 = vector.broadcast %178 : vector<16x1xf32> to vector<16x16xf32>
    %180 = arith.cmpf oeq, %176, %179 : vector<16x16xf32>
    %c1073741824_i32_55 = arith.constant 1073741824 : i32
    %181 = vector.broadcast %c1073741824_i32_55 : i32 to vector<16x16xi32>
    %182 = arith.select %180, %140, %181 : vector<16x16xi1>, vector<16x16xi32>
    %cst_56 = arith.constant dense<2147483647> : vector<16xi32>
    %183 = vector.multi_reduction <minsi>, %182, %cst_56 [1] : vector<16x16xi32> to vector<16xi32>
    %184 = vector.shape_cast %183 : vector<16xi32> to vector<16x1xi32>
    %185 = vector.broadcast %184 : vector<16x1xi32> to vector<16x16xi32>
    %186 = arith.cmpi eq, %140, %185 : vector<16x16xi32>
    %cst_57 = arith.constant 0xFF800000 : f32
    %187 = vector.broadcast %cst_57 : f32 to vector<16x16xf32>
    %188 = arith.select %186, %187, %176 : vector<16x16xi1>, vector<16x16xf32>
    %cst_58 = arith.constant dense<0xFF800000> : vector<16xf32>
    %189 = vector.multi_reduction <maximumf>, %188, %cst_58 [1] : vector<16x16xf32> to vector<16xf32>
    %190 = vector.shape_cast %189 : vector<16xf32> to vector<16x1xf32>
    %191 = vector.broadcast %190 : vector<16x1xf32> to vector<16x16xf32>
    %192 = arith.cmpf oeq, %188, %191 : vector<16x16xf32>
    %c1073741824_i32_59 = arith.constant 1073741824 : i32
    %193 = vector.broadcast %c1073741824_i32_59 : i32 to vector<16x16xi32>
    %194 = arith.select %192, %140, %193 : vector<16x16xi1>, vector<16x16xi32>
    %cst_60 = arith.constant dense<2147483647> : vector<16xi32>
    %195 = vector.multi_reduction <minsi>, %194, %cst_60 [1] : vector<16x16xi32> to vector<16xi32>
    %196 = vector.shape_cast %195 : vector<16xi32> to vector<16x1xi32>
    %197 = vector.broadcast %196 : vector<16x1xi32> to vector<16x16xi32>
    %198 = arith.cmpi eq, %140, %197 : vector<16x16xi32>
    %cst_61 = arith.constant 0xFF800000 : f32
    %199 = vector.broadcast %cst_61 : f32 to vector<16x16xf32>
    %200 = arith.select %198, %199, %188 : vector<16x16xi1>, vector<16x16xf32>
    %cst_62 = arith.constant dense<0xFF800000> : vector<16xf32>
    %201 = vector.multi_reduction <maximumf>, %200, %cst_62 [1] : vector<16x16xf32> to vector<16xf32>
    %202 = vector.shape_cast %201 : vector<16xf32> to vector<16x1xf32>
    %203 = vector.broadcast %202 : vector<16x1xf32> to vector<16x16xf32>
    %204 = arith.cmpf oeq, %200, %203 : vector<16x16xf32>
    %c1073741824_i32_63 = arith.constant 1073741824 : i32
    %205 = vector.broadcast %c1073741824_i32_63 : i32 to vector<16x16xi32>
    %206 = arith.select %204, %140, %205 : vector<16x16xi1>, vector<16x16xi32>
    %cst_64 = arith.constant dense<2147483647> : vector<16xi32>
    %207 = vector.multi_reduction <minsi>, %206, %cst_64 [1] : vector<16x16xi32> to vector<16xi32>
    %208 = vector.shape_cast %207 : vector<16xi32> to vector<16x1xi32>
    %209 = vector.broadcast %208 : vector<16x1xi32> to vector<16x16xi32>
    %210 = arith.cmpi eq, %140, %209 : vector<16x16xi32>
    %cst_65 = arith.constant 0xFF800000 : f32
    %211 = vector.broadcast %cst_65 : f32 to vector<16x16xf32>
    %212 = arith.select %210, %211, %200 : vector<16x16xi1>, vector<16x16xf32>
    %cst_66 = arith.constant dense<0xFF800000> : vector<16xf32>
    %213 = vector.multi_reduction <maximumf>, %212, %cst_66 [1] : vector<16x16xf32> to vector<16xf32>
    %214 = vector.shape_cast %213 : vector<16xf32> to vector<16x1xf32>
    %215 = vector.broadcast %214 : vector<16x1xf32> to vector<16x16xf32>
    %216 = arith.cmpf oeq, %212, %215 : vector<16x16xf32>
    %c1073741824_i32_67 = arith.constant 1073741824 : i32
    %217 = vector.broadcast %c1073741824_i32_67 : i32 to vector<16x16xi32>
    %218 = arith.select %216, %140, %217 : vector<16x16xi1>, vector<16x16xi32>
    %cst_68 = arith.constant dense<2147483647> : vector<16xi32>
    %219 = vector.multi_reduction <minsi>, %218, %cst_68 [1] : vector<16x16xi32> to vector<16xi32>
    %220 = vector.shape_cast %219 : vector<16xi32> to vector<16x1xi32>
    %221 = vector.broadcast %220 : vector<16x1xi32> to vector<16x16xi32>
    %222 = arith.cmpi eq, %140, %221 : vector<16x16xi32>
    %cst_69 = arith.constant 0xFF800000 : f32
    %223 = vector.broadcast %cst_69 : f32 to vector<16x16xf32>
    %224 = arith.select %222, %223, %212 : vector<16x16xi1>, vector<16x16xf32>
    %cst_70 = arith.constant dense<0xFF800000> : vector<16xf32>
    %225 = vector.multi_reduction <maximumf>, %224, %cst_70 [1] : vector<16x16xf32> to vector<16xf32>
    %226 = vector.shape_cast %225 : vector<16xf32> to vector<16x1xf32>
    %227 = vector.broadcast %226 : vector<16x1xf32> to vector<16x16xf32>
    %228 = arith.cmpf oeq, %224, %227 : vector<16x16xf32>
    %c1073741824_i32_71 = arith.constant 1073741824 : i32
    %229 = vector.broadcast %c1073741824_i32_71 : i32 to vector<16x16xi32>
    %230 = arith.select %228, %140, %229 : vector<16x16xi1>, vector<16x16xi32>
    %cst_72 = arith.constant dense<2147483647> : vector<16xi32>
    %231 = vector.multi_reduction <minsi>, %230, %cst_72 [1] : vector<16x16xi32> to vector<16xi32>
    %232 = vector.shape_cast %231 : vector<16xi32> to vector<16x1xi32>
    %233 = tpu.concatenate %142, %154, %166, %178, %190, %202, %214, %226 in 1 : vector<16x1xf32>, vector<16x1xf32>, vector<16x1xf32>, vector<16x1xf32>, vector<16x1xf32>, vector<16x1xf32>, vector<16x1xf32>, vector<16x1xf32> -> vector<16x8xf32>
    %234 = tpu.concatenate %148, %160, %172, %184, %196, %208, %220, %232 in 1 : vector<16x1xi32>, vector<16x1xi32>, vector<16x1xi32>, vector<16x1xi32>, vector<16x1xi32>, vector<16x1xi32>, vector<16x1xi32>, vector<16x1xi32> -> vector<16x8xi32>
    %c0_73 = arith.constant 0 : index
    %c0_74 = arith.constant 0 : index
    %235 = vector.load %arg6[%c0_73, %c0_74] : memref<16x8xf32, #tpu.memory_space<vmem>>, vector<16x8xf32>
    tpu.vector_store %arg6[%c0_73, %c0_74], %233 {strides = array<i32>} : memref<16x8xf32, #tpu.memory_space<vmem>>, vector<16x8xf32>,
    %c0_75 = arith.constant 0 : index
    %c0_76 = arith.constant 0 : index
    %236 = vector.load %arg7[%c0_75, %c0_76] : memref<16x8xi32, #tpu.memory_space<vmem>>, vector<16x8xi32>
    tpu.vector_store %arg7[%c0_75, %c0_76], %234 {strides = array<i32>} : memref<16x8xi32, #tpu.memory_space<vmem>>, vector<16x8xi32>,
    %c1_i32 = arith.constant 1 : i32
    %237 = arith.cmpi eq, %arg1, %c1_i32 : i32
    %238 = arith.extui %237 : i1 to i32
    %c0_i32_77 = arith.constant 0 : i32
    %239 = arith.cmpi ne, %238, %c0_i32_77 : i32
    scf.if %239 {
      %c0_78 = arith.constant 0 : index
      %c0_79 = arith.constant 0 : index
      %240 = vector.load %arg4[%c0_78, %c0_79] : memref<16x8xf32, #tpu.memory_space<vmem>>, vector<16x8xf32>
      tpu.vector_store %arg4[%c0_78, %c0_79], %233 {strides = array<i32>} : memref<16x8xf32, #tpu.memory_space<vmem>>, vector<16x8xf32>,
      %c0_80 = arith.constant 0 : index
      %c0_81 = arith.constant 0 : index
      %241 = vector.load %arg5[%c0_80, %c0_81] : memref<16x8xi32, #tpu.memory_space<vmem>>, vector<16x8xi32>
      tpu.vector_store %arg5[%c0_80, %c0_81], %234 {strides = array<i32>} : memref<16x8xi32, #tpu.memory_space<vmem>>, vector<16x8xi32>,
    } else {
    }
    return
  }
  func.func @transform_0(%arg0: i32, %arg1: i32) -> (i32, i32) {
    %c0_i32 = arith.constant 0 : i32
    %c0_i32_0 = arith.constant 0 : i32
    return %arg0, %c0_i32 : i32, i32
  }
  func.func @transform_1(%arg0: i32, %arg1: i32) -> (i32, i32) {
    %c0_i32 = arith.constant 0 : i32
    %c0_i32_0 = arith.constant 0 : i32
    return %c0_i32, %arg1 : i32, i32
  }
  func.func @transform_2(%arg0: i32, %arg1: i32) -> (i32, i32) {
    %c0_i32 = arith.constant 0 : i32
    %c0_i32_0 = arith.constant 0 : i32
    return %arg0, %c0_i32 : i32, i32
  }
  func.func @transform_3(%arg0: i32, %arg1: i32) -> (i32, i32) {
    %c0_i32 = arith.constant 0 : i32
    %c0_i32_0 = arith.constant 0 : i32
    return %arg0, %c0_i32 : i32, i32
  }
}

</mosaic_0001>

<llo_original>
// kernel: tpu_custom_call.1
$region0: #{tpu_custom_call.1}
  #allocation0 [shape = 'u32[]', space=smem, size = 0x4, offset = 0x4, fixed_abs, tag = 'smem constant byte address 0x4 - core index']
  #allocation1 [shape = 'u32[144,128]{1,0:T(1,128)}', space=vmem, size = 0x12000, scoped, tag = 'internal scratch']
  #allocation2 [shape = 'f32[16,8]{1,0:T(8,128)}', space=vmem, size = 0x2000, scoped, tag = 'scratch operand']
  #allocation3 [shape = 's32[16,8]{1,0:T(8,128)}', space=vmem, size = 0x2000, scoped, tag = 'scratch operand']
  %s0 = inlined_call_operand.hbm [shape: bf16[32,128], index: 0, kind: input, shape index: {}]
  %s1 = inlined_call_operand.hbm [shape: bf16[128,256], index: 1, kind: input, shape index: {}]
  %s2 = inlined_call_operand.vmem [shape: f32[32,8], index: 2, kind: output, shape index: {0}]
  %s3 = inlined_call_operand.vmem [shape: s32[32,8], index: 3, kind: output, shape index: {1}]
  %4 = xla_tuple %s2, %s3
  %s5 = sld [smem:[#allocation0]]
  $region65: #{tpu_custom_call.1} parent=0
    _
  %s7 = ssub.s32 1, %s5
  %s8 = scalar_select 0, %s7, %s5
  $region1: #{tpu_custom_call.1} parent=0
    #allocation4 [shape = 'u8[8192]{0}', space=vmem, size = 0x2000, scoped, tag = 'input window, operand 0']
    #allocation5 [shape = 's32[2]{0}', space=sflag, size = 0x8, scoped, tag = 'scoped memory for tpu_custom_call.1']
    #allocation6 [shape = 'u8[65536]{0}', space=vmem, size = 0x10000, scoped, tag = 'input window, operand 1']
    #allocation7 [shape = 's32[2]{0}', space=sflag, size = 0x8, scoped, tag = 'scoped memory for tpu_custom_call.1']
    %9 = vsyncpa [#allocation5], 0
    %s10 = scalar_lea.sflag [#allocation5], 1
    %11 = vsyncpa %s10, 0
    %12 = vsyncpa [#allocation7], 0
    %s13 = scalar_lea.sflag [#allocation7], 1
    %14 = vsyncpa %s13, 0
    loop: start=0, step=1, limit=6
    $region2: #{tpu_custom_call.1} parent=1 // loop_pre_header
      _
    $region3: #{tpu_custom_call.1} parent=1 // loop_header
      %s16 = sphi 0, %s20
      %p17 = scmp.ge.s32.totalorder %s16, 6
      %s23 = sphi 0, %s35
      %s24 = sphi 0, %s31
      %s25 = sphi 0, %s23
      %s26 = sphi 0, %s24
      %s27 = sphi 0, %s25
      %s28 = sphi 0, %s26
      %s38 = sphi 0, %s40
      %s41 = sphi 0, %s38
      %s42 = sphi 0, %s41
      %s58 = sphi 0, %s42
      %s64 = sphi 0, %s66
      %s67 = sphi 0, %s64
      %s68 = sphi 0, %s67
      %s84 = sphi 0, %s68
      %s90 = sphi 0, %s92
      %s93 = sphi 0, %s90
      %s94 = sphi 0, %s93
      %s110 = sphi 0, %s94
      %s116 = sphi 0, %s118
      %s119 = sphi 0, %s116
      %s120 = sphi 0, %s119
      %s136 = sphi 0, %s120
    $region4: #{tpu_custom_call.1} parent=1 // loop_header_branch
      %19 = sbr.rel (%p17) target = $region8
    $region5: #{tpu_custom_call.1} parent=1 // loop_body
      %s21 = ssub.s32 %s16, 1
      %s22 = ssub.s32 %s16, 2
      %s29 = sadd.s32 1, %s24
      %p30 = scmp.ge.s32.totalorder %s29, 2
      %s31 = scalar_select %p30, 0, %s29
      %s32 = sadd.s32 1, %s23
      %s33 = scalar_select %p30, %s32, %s23
      %p34 = scmp.ge.s32.totalorder %s33, 2
      %s35 = scalar_select %p34, 0, %s33
      %s36 = ssub.s32 %s23, %s35
      %p37 = scmp.eq.s32.totalorder %s36, 0
      %s39 = sadd.s32 %s38, 1
      %s40 = scalar_select %p37, %s38, %s39
      %p43 = pneg %p37
      %p44 = scmp.eq.s32.totalorder %s16, 3
      %p45 = por %p43, %p44
      %p46 = scmp.ne.s32.totalorder %s38, %s41
      %p47 = scmp.eq.s32.totalorder %s16, 0
      %p48 = por %p46, %p47
      %p49 = scmp.ne.s32.totalorder %s38, %s41
      %p50 = scmp.eq.s32.totalorder %s21, 3
      %p51 = por %p49, %p50
      %p52 = scmp.ne.s32.totalorder %s41, %s42
      %p53 = scmp.eq.s32.totalorder %s21, 0
      %p54 = por %p52, %p53
      %p55 = scmp.ne.s32.totalorder %s41, %s42
      %p56 = scmp.eq.s32.totalorder %s22, 3
      %p57 = por %p55, %p56
      %p59 = scmp.ne.s32.totalorder %s42, %s58
      %p60 = scmp.eq.s32.totalorder %s22, 0
      %p61 = por %p59, %p60
      %s62 = ssub.s32 %s24, %s31
      %p63 = scmp.eq.s32.totalorder %s62, 0
      %s65 = sadd.s32 %s64, 1
      %s66 = scalar_select %p63, %s64, %s65
      %p69 = pneg %p63
      %p70 = scmp.eq.s32.totalorder %s16, 3
      %p71 = por %p69, %p70
      %p72 = scmp.ne.s32.totalorder %s64, %s67
      %p73 = scmp.eq.s32.totalorder %s16, 0
      %p74 = por %p72, %p73
      %p75 = scmp.ne.s32.totalorder %s64, %s67
      %p76 = scmp.eq.s32.totalorder %s21, 3
      %p77 = por %p75, %p76
      %p78 = scmp.ne.s32.totalorder %s67, %s68
      %p79 = scmp.eq.s32.totalorder %s21, 0
      %p80 = por %p78, %p79
      %p81 = scmp.ne.s32.totalorder %s67, %s68
      %p82 = scmp.eq.s32.totalorder %s22, 3
      %p83 = por %p81, %p82
      %p85 = scmp.ne.s32.totalorder %s68, %s84
      %p86 = scmp.eq.s32.totalorder %s22, 0
      %p87 = por %p85, %p86
      %s88 = ssub.s32 %s23, %s35
      %p89 = scmp.eq.s32.totalorder %s88, 0
      %s91 = sadd.s32 %s90, 1
      %s92 = scalar_select %p89, %s90, %s91
      %p95 = pneg %p89
      %p96 = scmp.eq.s32.totalorder %s16, 3
      %p97 = por %p95, %p96
      %p98 = scmp.ne.s32.totalorder %s90, %s93
      %p99 = scmp.eq.s32.totalorder %s16, 0
      %p100 = por %p98, %p99
      %p101 = scmp.ne.s32.totalorder %s90, %s93
      %p102 = scmp.eq.s32.totalorder %s21, 3
      %p103 = por %p101, %p102
      %p104 = scmp.ne.s32.totalorder %s93, %s94
      %p105 = scmp.eq.s32.totalorder %s21, 0
      %p106 = por %p104, %p105
      %p107 = scmp.ne.s32.totalorder %s93, %s94
      %p108 = scmp.eq.s32.totalorder %s22, 3
      %p109 = por %p107, %p108
      %p111 = scmp.ne.s32.totalorder %s94, %s110
      %p112 = scmp.eq.s32.totalorder %s22, 0
      %p113 = por %p111, %p112
      %s114 = ssub.s32 %s23, %s35
      %p115 = scmp.eq.s32.totalorder %s114, 0
      %s117 = sadd.s32 %s116, 1
      %s118 = scalar_select %p115, %s116, %s117
      %p121 = pneg %p115
      %p122 = scmp.eq.s32.totalorder %s16, 3
      %p123 = por %p121, %p122
      %p124 = scmp.ne.s32.totalorder %s116, %s119
      %p125 = scmp.eq.s32.totalorder %s16, 0
      %p126 = por %p124, %p125
      %p127 = scmp.ne.s32.totalorder %s116, %s119
      %p128 = scmp.eq.s32.totalorder %s21, 3
      %p129 = por %p127, %p128
      %p130 = scmp.ne.s32.totalorder %s119, %s120
      %p131 = scmp.eq.s32.totalorder %s21, 0
      %p132 = por %p130, %p131
      %p133 = scmp.ne.s32.totalorder %s119, %s120
      %p134 = scmp.eq.s32.totalorder %s22, 3
      %p135 = por %p133, %p134
      %p137 = scmp.ne.s32.totalorder %s120, %s136
      %p138 = scmp.eq.s32.totalorder %s22, 0
      %p139 = por %p137, %p138
      %p140 = scmp.le.s32.totalorder 1, %s16
      %p141 = scmp.lt.s32.totalorder %s16, 5
      %p142 = pnand %p140, %p141
      %p143 = pneg %p142
      // Predicated region
      $region9: #{tpu_custom_call.1} parent=5 // pred_check
        _
      $region10: #{tpu_custom_call.1} parent=5 // pred_check_branch
        %145 = sbr.rel (%p142) target = $region12
      $region11: #{tpu_custom_call.1} parent=5 // pred_region
        %s146 = ssub.s32 %s16, 1
      $region12: #{tpu_custom_call.1} parent=5 // pred_fallthru
        _
      %p147 = scmp.lt.s32.totalorder %s16, 4
      // Predicated region
      $region13: #{tpu_custom_call.1} parent=5 // pred_check
        %p148 = pneg %p147
      $region14: #{tpu_custom_call.1} parent=5 // pred_check_branch
        %150 = sbr.rel (%p148) target = $region16
      $region15: #{tpu_custom_call.1} parent=5 // pred_region
        // Predicated region
        $region17: #{tpu_custom_call.1} parent=15 // pred_check
          %p151 = pneg %p48
        $region18: #{tpu_custom_call.1} parent=15 // pred_check_branch
          %153 = sbr.rel (%p151) target = $region20
        $region19: #{tpu_custom_call.1} parent=15 // pred_region
          %s154 = sand.u32 %s38, 1
          %s155 = scalar_lea.sflag [#allocation5], %s154
          %s156 = sand.u32 %s38, 1
          %s157 = smul.addr %s156, 8
          %s158 = scalar_lea.vmem [#allocation4], %s157
          %s159 = smul.u32 2, %s23
          %s161 = ssub.s32 128, 128
          %162 = vsyncadd %s155, %s161
          %s163 = smul.addr %s159, 64
          %s164 = scalar_lea.hbm %s0, %s163
          %s165 = sshll.u32 %s158, 4
          %s166 = int_to_ptr.vmem [resolvable:$true] %s165
          %171 = dma.hbm_to_vmem [thread:$0]  %s164, 128, %s166, %s155, 64, 64, 4
        $region20: #{tpu_custom_call.1} parent=15 // pred_fallthru
          _
        // Predicated region
        $region21: #{tpu_custom_call.1} parent=15 // pred_check
          %p172 = pneg %p74
        $region22: #{tpu_custom_call.1} parent=15 // pred_check_branch
          %174 = sbr.rel (%p172) target = $region24
        $region23: #{tpu_custom_call.1} parent=15 // pred_region
          %s175 = sand.u32 %s64, 1
          %s176 = scalar_lea.sflag [#allocation7], %s175
          %s177 = sand.u32 %s64, 1
          %s178 = smul.addr %s177, 64
          %s179 = scalar_lea.vmem [#allocation6], %s178
          %s181 = ssub.s32 1024, 1024
          %182 = vsyncadd %s176, %s181
          %s183 = smul.addr %s24, 64
          %s184 = scalar_lea.hbm %s1, %s183
          %s185 = sshll.u32 %s179, 4
          %s186 = int_to_ptr.vmem [resolvable:$true] %s185
          %191 = dma.hbm_to_vmem [thread:$0]  %s184, 1024, %s186, %s176, 128, 64, 4
        $region24: #{tpu_custom_call.1} parent=15 // pred_fallthru
          _
      $region16: #{tpu_custom_call.1} parent=5 // pred_fallthru
        _
      %p192 = scmp.le.s32.totalorder 1, %s16
      %p193 = scmp.lt.s32.totalorder %s16, 5
      %p194 = pnand %p192, %p193
      %p195 = pneg %p194
      // Predicated region
      $region25: #{tpu_custom_call.1} parent=5 // pred_check
        _
      $region26: #{tpu_custom_call.1} parent=5 // pred_check_branch
        %197 = sbr.rel (%p194) target = $region28
      $region27: #{tpu_custom_call.1} parent=5 // pred_region
        %s198 = ssub.s32 %s16, 1
        %s199 = sand.u32 %s41, 1
        %s200 = scalar_lea.sflag [#allocation5], %s199
        %s201 = sand.u32 %s41, 1
        %s202 = smul.addr %s201, 8
        %s203 = scalar_lea.vmem [#allocation4], %s202
        // Predicated region
        $region29: #{tpu_custom_call.1} parent=27 // pred_check
          %p204 = pneg %p54
        $region30: #{tpu_custom_call.1} parent=27 // pred_check_branch
          %206 = sbr.rel (%p204) target = $region32
        $region31: #{tpu_custom_call.1} parent=27 // pred_region
          %207 = dma.done %s200, 128
        $region32: #{tpu_custom_call.1} parent=27 // pred_fallthru
          _
        %s208 = sand.u32 %s67, 1
        %s209 = scalar_lea.sflag [#allocation7], %s208
        %s210 = sand.u32 %s67, 1
        %s211 = smul.addr %s210, 64
        %s212 = scalar_lea.vmem [#allocation6], %s211
        // Predicated region
        $region33: #{tpu_custom_call.1} parent=27 // pred_check
          %p213 = pneg %p80
        $region34: #{tpu_custom_call.1} parent=27 // pred_check_branch
          %215 = sbr.rel (%p213) target = $region36
        $region35: #{tpu_custom_call.1} parent=27 // pred_region
          %216 = dma.done %s209, 1024
        $region36: #{tpu_custom_call.1} parent=27 // pred_fallthru
          _
        %s217 = sand.u32 %s41, 1
        %s218 = scalar_lea.sflag [#allocation5], %s217
        %s219 = sand.u32 %s41, 1
        %s220 = smul.addr %s219, 8
        %s221 = scalar_lea.vmem [#allocation4], %s220
        %p222 = pneg %p54
        %p223 = pneg %p51
        %s224 = sand.u32 %s67, 1
        %s225 = scalar_lea.sflag [#allocation7], %s224
        %s226 = sand.u32 %s67, 1
        %s227 = smul.addr %s226, 64
        %s228 = scalar_lea.vmem [#allocation6], %s227
        %p229 = pneg %p80
        %p230 = pneg %p77
        %p231 = pneg %p106
        %p232 = pneg %p103
        %s233 = smul.u32 2, %s25
        %p234 = scmp.lt.s32.totalorder %s233, 3
        %s235 = scalar_select %p234, %s233, 3
        %s236 = smul.addr %s235, 8
        %s237 = scalar_lea.vmem %s2, %s236
        %p238 = pneg %p132
        %p239 = pneg %p129
        %s240 = smul.u32 2, %s25
        %p241 = scmp.lt.s32.totalorder %s240, 3
        %s242 = scalar_select %p241, %s240, 3
        %s243 = smul.addr %s242, 8
        %s244 = scalar_lea.vmem %s3, %s243
        %s245 = smul.u32 2, %s25
        %s246 = smul.u32 2, %s25
        %p247 = scmp.lt.s32.totalorder %s246, 3
        %s248 = scalar_select %p247, %s246, 3
        %s249 = smul.addr %s248, 8
        %s250 = scalar_lea.vmem %s2, %s249
        %s251 = smul.u32 2, %s25
        %s252 = smul.u32 2, %s25
        %p253 = scmp.lt.s32.totalorder %s252, 3
        %s254 = scalar_select %p253, %s252, 3
        %s255 = smul.addr %s254, 8
        %s256 = scalar_lea.vmem %s3, %s255
        %s257 = smul.u32 2, %s25
        %p259 = scmp.eq.s32.totalorder %s26, 0
        // Predicated region
        $region37: #{tpu_custom_call.1} parent=27 // pred_check
          %p260 = pneg %p259
        $region38: #{tpu_custom_call.1} parent=27 // pred_check_branch
          %262 = sbr.rel (%p260) target = $region40
        $region39: #{tpu_custom_call.1} parent=27 // pred_region
          %vm263 = vcmask 64512
          %264 = vst.msk [vmem:[#allocation2] sm:$0xff] %vm263, -inf
          %265 = vst.msk [vmem:[#allocation2 + $0x8] sm:$0xff] %vm263, -inf
          %v266 = vlaneseq
          %v267 = vand.u32 %v266, 127
          %v268 = vadd.s32 %v267, 268435456
          %269 = vst.msk [vmem:[#allocation3] sm:$0xff] %vm263, %v268
          %270 = vst.msk [vmem:[#allocation3 + $0x8] sm:$0xff] %vm263, %v268
        $region40: #{tpu_custom_call.1} parent=27 // pred_fallthru
          _
        %v271 = vld [vmem:[%s203] sm:$0xf]
        %v272 = vld [vmem:[%s203 + $0x4] sm:$0xf]
        %v273 = vld [vmem:[%s212] sm:$0xf]
        %v274 = vld [vmem:[%s212 + $0x4] sm:$0xf]
        %v275 = vld [vmem:[%s212 + $0x8] sm:$0xf]
        %v276 = vld [vmem:[%s212 + $0xc] sm:$0xf]
        %v277 = vld [vmem:[%s212 + $0x10] sm:$0xf]
        %v278 = vld [vmem:[%s212 + $0x14] sm:$0xf]
        %v279 = vld [vmem:[%s212 + $0x18] sm:$0xf]
        %v280 = vld [vmem:[%s212 + $0x1c] sm:$0xf]
        %v281 = vld [vmem:[%s212 + $0x20] sm:$0xf]
        %v282 = vld [vmem:[%s212 + $0x24] sm:$0xf]
        %v283 = vld [vmem:[%s212 + $0x28] sm:$0xf]
        %v284 = vld [vmem:[%s212 + $0x2c] sm:$0xf]
        %v285 = vld [vmem:[%s212 + $0x30] sm:$0xf]
        %v286 = vld [vmem:[%s212 + $0x34] sm:$0xf]
        %v287 = vld [vmem:[%s212 + $0x38] sm:$0xf]
        %v288 = vld [vmem:[%s212 + $0x3c] sm:$0xf]
        %v291 = vunpack.c.l.b16 %v271
        %v292 = vunpack.c.l.b16 %v272
        %v293 = vpack.c.b16 %v292, %v291
        %v311 = vunpack.c.l.b16 %v273
        %v312 = vunpack.c.l.b16 %v274
        %v313 = vunpack.c.l.b16 %v275
        %v314 = vunpack.c.l.b16 %v276
        %v315 = vunpack.c.l.b16 %v277
        %v316 = vunpack.c.l.b16 %v278
        %v317 = vunpack.c.l.b16 %v279
        %v318 = vunpack.c.l.b16 %v280
        %v319 = vunpack.c.l.b16 %v281
        %v320 = vunpack.c.l.b16 %v282
        %v321 = vunpack.c.l.b16 %v283
        %v322 = vunpack.c.l.b16 %v284
        %v323 = vunpack.c.l.b16 %v285
        %v324 = vunpack.c.l.b16 %v286
        %v325 = vunpack.c.l.b16 %v287
        %v326 = vunpack.c.l.b16 %v288
        %v327 = vpack.c.b16 %v312, %v311
        %v328 = vpack.c.b16 %v314, %v313
        %v329 = vpack.c.b16 %v316, %v315
        %v330 = vpack.c.b16 %v318, %v317
        %v331 = vpack.c.b16 %v320, %v319
        %v332 = vpack.c.b16 %v322, %v321
        %v333 = vpack.c.b16 %v324, %v323
        %v334 = vpack.c.b16 %v326, %v325
        %343 = vmatprep.subr.bf16.mxu0 0
        %344 = vmatpush1.bf16.msra.mxu0 %v327
        %345 = vmatprep.subr.bf16.mxu0 0
        %346 = vmatpush1.bf16.msra.mxu0 %v328
        %347 = vmatprep.subr.bf16.mxu0 0
        %348 = vmatpush1.bf16.msra.mxu0 %v329
        %349 = vmatprep.subr.bf16.mxu0 0
        %350 = vmatpush1.bf16.msra.mxu0 %v330
        %351 = vmatprep.subr.bf16.mxu0 0
        %352 = vmatpush1.bf16.msra.mxu0 %v331
        %353 = vmatprep.subr.bf16.mxu0 0
        %354 = vmatpush1.bf16.msra.mxu0 %v332
        %355 = vmatprep.subr.bf16.mxu0 0
        %356 = vmatpush1.bf16.msra.mxu0 %v333
        %357 = vmatprep.subr.bf16.mxu0 0
        %358 = vmatpush1.bf16.msra.mxu0 %v334
        %359 = vmatprep.subr.bf16.mxu0 0
        %360 = vmatpush1.bf16.msra.mxu0 0
        %361 = vmatprep.subr.bf16.mxu0 0
        %362 = vmatpush1.bf16.msra.mxu0 0
        %363 = vmatprep.subr.bf16.mxu0 0
        %364 = vmatpush1.bf16.msra.mxu0 0
        %365 = vmatprep.subr.bf16.mxu0 0
        %366 = vmatpush1.bf16.msra.mxu0 0
        %367 = vmatprep.subr.bf16.mxu0 0
        %368 = vmatpush1.bf16.msra.mxu0 0
        %369 = vmatprep.subr.bf16.mxu0 0
        %370 = vmatpush1.bf16.msra.mxu0 0
        %371 = vmatprep.subr.bf16.mxu0 0
        %372 = vmatpush1.bf16.msra.mxu0 0
        %373 = vmatprep.subr.bf16.mxu0 0
        %374 = vmatpush1.bf16.msra.mxu0 0
        %375 = vmatprep.mubr.bf16.mxu0 0
        %376 = vmatmul.mubr.bf16.gmra.mrb[0].mxu0 %v293
        %v377 = vpop.f32.mrb[0].mxu0
        %v378 = vadd.f32 0.0, %v377
        %v379 = vpop.f32.mrb[0].mxu0
        %v380 = vpop.f32.mrb[0].mxu0
        %v381 = vadd.f32 0.0, %v380
        %v382 = vpop.f32.mrb[0].mxu0
        %383 = vdwg.mxu0
        %s384 = smul.u32 %s26, 128
        %v385 = vlaneseq
        %v386 = vand.u32 %v385, 127
        %v387 = vld [vmem:[#allocation2] sm:$0xff]
        %v388 = vld [vmem:[#allocation2 + $0x8] sm:$0xff]
        %v389 = vld [vmem:[#allocation3] sm:$0xff]
        %v390 = vld [vmem:[#allocation3 + $0x8] sm:$0xff]
        %v391 = vstv %s384
        %v392 = vadd.s32 %v386, %v391
        %vm393 = vcmp.lt.s32.totalorder %v392, 200
        %v394 = vsel %vm393, 1, 0
        %vm395 = vcmp.eq.s32.totalorder %v394, 1
        %v396 = vsel %vm395, %v378, -inf
        %v397 = vsel %vm395, %v381, -inf
        %398 = vmax.xlane.f32.xlu0 %v396
        %v399 = vpop.xlane.xlu0 %398
        %400 = vmax.xlane.f32.xlu0 %v397
        %v401 = vpop.xlane.xlu0 %400
        %vm402 = vcmp.eq.f32.partialorder %v396, %v399
        %vm403 = vcmp.eq.f32.partialorder %v397, %v401
        %v404 = vsel %vm402, %v386, 128
        %v405 = vsel %vm403, %v386, 128
        %v406 = vand.u32 %v404, 65535
        %v407 = vshra.s32 %v404, 16
        %v408 = vcvt.s32.f32 %v406
        %v409 = vcvt.s32.f32 %v407
        %410 = vmin.xlane.f32.xlu0 %v409
        %v411 = vpop.xlane.xlu0 %410
        %vm412 = vcmp.eq.f32.partialorder %v409, %v411
        %v413 = vsel %vm412, %v408, inf
        %414 = vmin.xlane.f32.xlu0 %v413
        %v415 = vpop.xlane.xlu0 %414
        %v416 = vcvt.f32.s32 %v415
        %v417 = vcvt.f32.s32 %v411
        %v418 = vshll.u32 %v417, 16
        %v419 = vadd.s32 %v418, %v416
        %v420 = vand.u32 %v405, 65535
        %v421 = vshra.s32 %v405, 16
        %v422 = vcvt.s32.f32 %v420
        %v423 = vcvt.s32.f32 %v421
        %424 = vmin.xlane.f32.xlu0 %v423
        %v425 = vpop.xlane.xlu0 %424
        %vm426 = vcmp.eq.f32.partialorder %v423, %v425
        %v427 = vsel %vm426, %v422, inf
        %428 = vmin.xlane.f32.xlu0 %v427
        %v429 = vpop.xlane.xlu0 %428
        %v430 = vcvt.f32.s32 %v429
        %v431 = vcvt.f32.s32 %v425
        %v432 = vshll.u32 %v431, 16
        %v433 = vadd.s32 %v432, %v430
        %vm434 = vcmp.eq.s32.totalorder %v386, %v419
        %vm435 = vcmp.eq.s32.totalorder %v386, %v433
        %v436 = vsel %vm434, -inf, %v396
        %v437 = vsel %vm435, -inf, %v397
        %438 = vmax.xlane.f32.xlu0 %v436
        %v439 = vpop.xlane.xlu0 %438
        %440 = vmax.xlane.f32.xlu0 %v437
        %v441 = vpop.xlane.xlu0 %440
        %vm442 = vcmp.eq.f32.partialorder %v436, %v439
        %vm443 = vcmp.eq.f32.partialorder %v437, %v441
        %v444 = vsel %vm442, %v386, 128
        %v445 = vsel %vm443, %v386, 128
        %v446 = vand.u32 %v444, 65535
        %v447 = vshra.s32 %v444, 16
        %v448 = vcvt.s32.f32 %v446
        %v449 = vcvt.s32.f32 %v447
        %450 = vmin.xlane.f32.xlu0 %v449
        %v451 = vpop.xlane.xlu0 %450
        %vm452 = vcmp.eq.f32.partialorder %v449, %v451
        %v453 = vsel %vm452, %v448, inf
        %454 = vmin.xlane.f32.xlu0 %v453
        %v455 = vpop.xlane.xlu0 %454
        %v456 = vcvt.f32.s32 %v455
        %v457 = vcvt.f32.s32 %v451
        %v458 = vshll.u32 %v457, 16
        %v459 = vadd.s32 %v458, %v456
        %v460 = vand.u32 %v445, 65535
        %v461 = vshra.s32 %v445, 16
        %v462 = vcvt.s32.f32 %v460
        %v463 = vcvt.s32.f32 %v461
        %464 = vmin.xlane.f32.xlu0 %v463
        %v465 = vpop.xlane.xlu0 %464
        %vm466 = vcmp.eq.f32.partialorder %v463, %v465
        %v467 = vsel %vm466, %v462, inf
        %468 = vmin.xlane.f32.xlu0 %v467
        %v469 = vpop.xlane.xlu0 %468
        %v470 = vcvt.f32.s32 %v469
        %v471 = vcvt.f32.s32 %v465
        %v472 = vshll.u32 %v471, 16
        %v473 = vadd.s32 %v472, %v470
        %vm474 = vcmp.eq.s32.totalorder %v386, %v459
        %vm475 = vcmp.eq.s32.totalorder %v386, %v473
        %v476 = vsel %vm474, -inf, %v436
        %v477 = vsel %vm475, -inf, %v437
        %478 = vmax.xlane.f32.xlu0 %v476
        %v479 = vpop.xlane.xlu0 %478
        %480 = vmax.xlane.f32.xlu0 %v477
        %v481 = vpop.xlane.xlu0 %480
        %vm482 = vcmp.eq.f32.partialorder %v476, %v479
        %vm483 = vcmp.eq.f32.partialorder %v477, %v481
        %v484 = vsel %vm482, %v386, 128
        %v485 = vsel %vm483, %v386, 128
        %v486 = vand.u32 %v484, 65535
        %v487 = vshra.s32 %v484, 16
        %v488 = vcvt.s32.f32 %v486
        %v489 = vcvt.s32.f32 %v487
        %490 = vmin.xlane.f32.xlu0 %v489
        %v491 = vpop.xlane.xlu0 %490
        %vm492 = vcmp.eq.f32.partialorder %v489, %v491
        %v493 = vsel %vm492, %v488, inf
        %494 = vmin.xlane.f32.xlu0 %v493
        %v495 = vpop.xlane.xlu0 %494
        %v496 = vcvt.f32.s32 %v495
        %v497 = vcvt.f32.s32 %v491
        %v498 = vshll.u32 %v497, 16
        %v499 = vadd.s32 %v498, %v496
        %v500 = vand.u32 %v485, 65535
        %v501 = vshra.s32 %v485, 16
        %v502 = vcvt.s32.f32 %v500
        %v503 = vcvt.s32.f32 %v501
        %504 = vmin.xlane.f32.xlu0 %v503
        %v505 = vpop.xlane.xlu0 %504
        %vm506 = vcmp.eq.f32.partialorder %v503, %v505
        %v507 = vsel %vm506, %v502, inf
        %508 = vmin.xlane.f32.xlu0 %v507
        %v509 = vpop.xlane.xlu0 %508
        %v510 = vcvt.f32.s32 %v509
        %v511 = vcvt.f32.s32 %v505
        %v512 = vshll.u32 %v511, 16
        %v513 = vadd.s32 %v512, %v510
        %vm514 = vcmp.eq.s32.totalorder %v386, %v499
        %vm515 = vcmp.eq.s32.totalorder %v386, %v513
        %v516 = vsel %vm514, -inf, %v476
        %v517 = vsel %vm515, -inf, %v477
        %518 = vmax.xlane.f32.xlu0 %v516
        %v519 = vpop.xlane.xlu0 %518
        %520 = vmax.xlane.f32.xlu0 %v517
        %v521 = vpop.xlane.xlu0 %520
        %vm522 = vcmp.eq.f32.partialorder %v516, %v519
        %vm523 = vcmp.eq.f32.partialorder %v517, %v521
        %v524 = vsel %vm522, %v386, 128
        %v525 = vsel %vm523, %v386, 128
        %v526 = vand.u32 %v524, 65535
        %v527 = vshra.s32 %v524, 16
        %v528 = vcvt.s32.f32 %v526
        %v529 = vcvt.s32.f32 %v527
        %530 = vmin.xlane.f32.xlu0 %v529
        %v531 = vpop.xlane.xlu0 %530
        %vm532 = vcmp.eq.f32.partialorder %v529, %v531
        %v533 = vsel %vm532, %v528, inf
        %534 = vmin.xlane.f32.xlu0 %v533
        %v535 = vpop.xlane.xlu0 %534
        %v536 = vcvt.f32.s32 %v535
        %v537 = vcvt.f32.s32 %v531
        %v538 = vshll.u32 %v537, 16
        %v539 = vadd.s32 %v538, %v536
        %v540 = vand.u32 %v525, 65535
        %v541 = vshra.s32 %v525, 16
        %v542 = vcvt.s32.f32 %v540
        %v543 = vcvt.s32.f32 %v541
        %544 = vmin.xlane.f32.xlu0 %v543
        %v545 = vpop.xlane.xlu0 %544
        %vm546 = vcmp.eq.f32.partialorder %v543, %v545
        %v547 = vsel %vm546, %v542, inf
        %548 = vmin.xlane.f32.xlu0 %v547
        %v549 = vpop.xlane.xlu0 %548
        %v550 = vcvt.f32.s32 %v549
        %v551 = vcvt.f32.s32 %v545
        %v552 = vshll.u32 %v551, 16
        %v553 = vadd.s32 %v552, %v550
        %vm554 = vcmp.eq.s32.totalorder %v386, %v539
        %vm555 = vcmp.eq.s32.totalorder %v386, %v553
        %v556 = vsel %vm554, -inf, %v516
        %v557 = vsel %vm555, -inf, %v517
        %558 = vmax.xlane.f32.xlu0 %v556
        %v559 = vpop.xlane.xlu0 %558
        %560 = vmax.xlane.f32.xlu0 %v557
        %v561 = vpop.xlane.xlu0 %560
        %vm562 = vcmp.eq.f32.partialorder %v556, %v559
        %vm563 = vcmp.eq.f32.partialorder %v557, %v561
        %v564 = vsel %vm562, %v386, 128
        %v565 = vsel %vm563, %v386, 128
        %v566 = vand.u32 %v564, 65535
        %v567 = vshra.s32 %v564, 16
        %v568 = vcvt.s32.f32 %v566
        %v569 = vcvt.s32.f32 %v567
        %570 = vmin.xlane.f32.xlu0 %v569
        %v571 = vpop.xlane.xlu0 %570
        %vm572 = vcmp.eq.f32.partialorder %v569, %v571
        %v573 = vsel %vm572, %v568, inf
        %574 = vmin.xlane.f32.xlu0 %v573
        %v575 = vpop.xlane.xlu0 %574
        %v576 = vcvt.f32.s32 %v575
        %v577 = vcvt.f32.s32 %v571
        %v578 = vshll.u32 %v577, 16
        %v579 = vadd.s32 %v578, %v576
        %v580 = vand.u32 %v565, 65535
        %v581 = vshra.s32 %v565, 16
        %v582 = vcvt.s32.f32 %v580
        %v583 = vcvt.s32.f32 %v581
        %584 = vmin.xlane.f32.xlu0 %v583
        %v585 = vpop.xlane.xlu0 %584
        %vm586 = vcmp.eq.f32.partialorder %v583, %v585
        %v587 = vsel %vm586, %v582, inf
        %588 = vmin.xlane.f32.xlu0 %v587
        %v589 = vpop.xlane.xlu0 %588
        %v590 = vcvt.f32.s32 %v589
        %v591 = vcvt.f32.s32 %v585
        %v592 = vshll.u32 %v591, 16
        %v593 = vadd.s32 %v592, %v590
        %vm594 = vcmp.eq.s32.totalorder %v386, %v579
        %vm595 = vcmp.eq.s32.totalorder %v386, %v593
        %v596 = vsel %vm594, -inf, %v556
        %v597 = vsel %vm595, -inf, %v557
        %598 = vmax.xlane.f32.xlu0 %v596
        %v599 = vpop.xlane.xlu0 %598
        %600 = vmax.xlane.f32.xlu0 %v597
        %v601 = vpop.xlane.xlu0 %600
        %vm602 = vcmp.eq.f32.partialorder %v596, %v599
        %vm603 = vcmp.eq.f32.partialorder %v597, %v601
        %v604 = vsel %vm602, %v386, 128
        %v605 = vsel %vm603, %v386, 128
        %v606 = vand.u32 %v604, 65535
        %v607 = vshra.s32 %v604, 16
        %v608 = vcvt.s32.f32 %v606
        %v609 = vcvt.s32.f32 %v607
        %610 = vmin.xlane.f32.xlu0 %v609
        %v611 = vpop.xlane.xlu0 %610
        %vm612 = vcmp.eq.f32.partialorder %v609, %v611
        %v613 = vsel %vm612, %v608, inf
        %614 = vmin.xlane.f32.xlu0 %v613
        %v615 = vpop.xlane.xlu0 %614
        %v616 = vcvt.f32.s32 %v615
        %v617 = vcvt.f32.s32 %v611
        %v618 = vshll.u32 %v617, 16
        %v619 = vadd.s32 %v618, %v616
        %v620 = vand.u32 %v605, 65535
        %v621 = vshra.s32 %v605, 16
        %v622 = vcvt.s32.f32 %v620
        %v623 = vcvt.s32.f32 %v621
        %624 = vmin.xlane.f32.xlu0 %v623
        %v625 = vpop.xlane.xlu0 %624
        %vm626 = vcmp.eq.f32.partialorder %v623, %v625
        %v627 = vsel %vm626, %v622, inf
        %628 = vmin.xlane.f32.xlu0 %v627
        %v629 = vpop.xlane.xlu0 %628
        %v630 = vcvt.f32.s32 %v629
        %v631 = vcvt.f32.s32 %v625
        %v632 = vshll.u32 %v631, 16
        %v633 = vadd.s32 %v632, %v630
        %vm634 = vcmp.eq.s32.totalorder %v386, %v619
        %vm635 = vcmp.eq.s32.totalorder %v386, %v633
        %v636 = vsel %vm634, -inf, %v596
        %v637 = vsel %vm635, -inf, %v597
        %638 = vmax.xlane.f32.xlu0 %v636
        %v639 = vpop.xlane.xlu0 %638
        %640 = vmax.xlane.f32.xlu0 %v637
        %v641 = vpop.xlane.xlu0 %640
        %vm642 = vcmp.eq.f32.partialorder %v636, %v639
        %vm643 = vcmp.eq.f32.partialorder %v637, %v641
        %v644 = vsel %vm642, %v386, 128
        %v645 = vsel %vm643, %v386, 128
        %v646 = vand.u32 %v644, 65535
        %v647 = vshra.s32 %v644, 16
        %v648 = vcvt.s32.f32 %v646
        %v649 = vcvt.s32.f32 %v647
        %650 = vmin.xlane.f32.xlu0 %v649
        %v651 = vpop.xlane.xlu0 %650
        %vm652 = vcmp.eq.f32.partialorder %v649, %v651
        %v653 = vsel %vm652, %v648, inf
        %654 = vmin.xlane.f32.xlu0 %v653
        %v655 = vpop.xlane.xlu0 %654
        %v656 = vcvt.f32.s32 %v655
        %v657 = vcvt.f32.s32 %v651
        %v658 = vshll.u32 %v657, 16
        %v659 = vadd.s32 %v658, %v656
        %v660 = vand.u32 %v645, 65535
        %v661 = vshra.s32 %v645, 16
        %v662 = vcvt.s32.f32 %v660
        %v663 = vcvt.s32.f32 %v661
        %664 = vmin.xlane.f32.xlu0 %v663
        %v665 = vpop.xlane.xlu0 %664
        %vm666 = vcmp.eq.f32.partialorder %v663, %v665
        %v667 = vsel %vm666, %v662, inf
        %668 = vmin.xlane.f32.xlu0 %v667
        %v669 = vpop.xlane.xlu0 %668
        %v670 = vcvt.f32.s32 %v669
        %v671 = vcvt.f32.s32 %v665
        %v672 = vshll.u32 %v671, 16
        %v673 = vadd.s32 %v672, %v670
        %vm674 = vcmp.eq.s32.totalorder %v386, %v659
        %vm675 = vcmp.eq.s32.totalorder %v386, %v673
        %v676 = vsel %vm674, -inf, %v636
        %v677 = vsel %vm675, -inf, %v637
        %678 = vmax.xlane.f32.xlu0 %v676
        %v679 = vpop.xlane.xlu0 %678
        %680 = vmax.xlane.f32.xlu0 %v677
        %v681 = vpop.xlane.xlu0 %680
        %vm682 = vcmp.eq.f32.partialorder %v676, %v679
        %vm683 = vcmp.eq.f32.partialorder %v677, %v681
        %v684 = vsel %vm682, %v386, 128
        %v685 = vsel %vm683, %v386, 128
        %v686 = vand.u32 %v684, 65535
        %v687 = vshra.s32 %v684, 16
        %v688 = vcvt.s32.f32 %v686
        %v689 = vcvt.s32.f32 %v687
        %690 = vmin.xlane.f32.xlu0 %v689
        %v691 = vpop.xlane.xlu0 %690
        %vm692 = vcmp.eq.f32.partialorder %v689, %v691
        %v693 = vsel %vm692, %v688, inf
        %694 = vmin.xlane.f32.xlu0 %v693
        %v695 = vpop.xlane.xlu0 %694
        %v696 = vcvt.f32.s32 %v695
        %v697 = vcvt.f32.s32 %v691
        %v698 = vshll.u32 %v697, 16
        %v699 = vadd.s32 %v698, %v696
        %v700 = vand.u32 %v685, 65535
        %v701 = vshra.s32 %v685, 16
        %v702 = vcvt.s32.f32 %v700
        %v703 = vcvt.s32.f32 %v701
        %704 = vmin.xlane.f32.xlu0 %v703
        %v705 = vpop.xlane.xlu0 %704
        %vm706 = vcmp.eq.f32.partialorder %v703, %v705
        %v707 = vsel %vm706, %v702, inf
        %708 = vmin.xlane.f32.xlu0 %v707
        %v709 = vpop.xlane.xlu0 %708
        %v710 = vcvt.f32.s32 %v709
        %v711 = vcvt.f32.s32 %v705
        %v712 = vshll.u32 %v711, 16
        %v713 = vadd.s32 %v712, %v710
        %vm714 = vcmask 7168
        %v715 = vsel %vm714, %v399, %v439
        %v716 = vsel %vm714, %v401, %v441
        %vm717 = vcmask 15360
        %v718 = vsel %vm717, %v715, %v479
        %v719 = vsel %vm717, %v716, %v481
        %vm720 = vcmask 23552
        %v721 = vsel %vm720, %v718, %v519
        %v722 = vsel %vm720, %v719, %v521
        %vm723 = vcmask 31744
        %v724 = vsel %vm723, %v721, %v559
        %v725 = vsel %vm723, %v722, %v561
        %vm726 = vcmask 39936
        %v727 = vsel %vm726, %v724, %v599
        %v728 = vsel %vm726, %v725, %v601
        %vm729 = vcmask 48128
        %v730 = vsel %vm729, %v727, %v639
        %v731 = vsel %vm729, %v728, %v641
        %vm732 = vcmask 56320
        %v733 = vsel %vm732, %v730, %v679
        %v734 = vsel %vm732, %v731, %v681
        %v735 = vsel %vm714, %v419, %v459
        %v736 = vsel %vm714, %v433, %v473
        %v737 = vsel %vm717, %v735, %v499
        %v738 = vsel %vm717, %v736, %v513
        %v739 = vsel %vm720, %v737, %v539
        %v740 = vsel %vm720, %v738, %v553
        %v741 = vsel %vm723, %v739, %v579
        %v742 = vsel %vm723, %v740, %v593
        %v743 = vsel %vm726, %v741, %v619
        %v744 = vsel %vm726, %v742, %v633
        %v745 = vsel %vm729, %v743, %v659
        %v746 = vsel %vm729, %v744, %v673
        %v747 = vsel %vm732, %v745, %v699
        %v748 = vsel %vm732, %v746, %v713
        %v749 = vadd.s32 %v747, %v391
        %v750 = vadd.s32 %v748, %v391
        %753 = vrot.lane.b32.xlu0 %v733, 8
        %v754 = vpop.permute.xlu0 %753
        %755 = vrot.lane.b32.xlu0 %v734, 8
        %v756 = vpop.permute.xlu0 %755
        %vm759 = vcmask 64512
        %v760 = vsel %vm759, %v387, %v754
        %v761 = vsel %vm759, %v388, %v756
        %762 = vrot.lane.b32.xlu0 %v749, 8
        %v763 = vpop.permute.xlu0 %762
        %764 = vrot.lane.b32.xlu0 %v750, 8
        %v765 = vpop.permute.xlu0 %764
        %v766 = vsel %vm759, %v389, %v763
        %v767 = vsel %vm759, %v390, %v765
        %vm768 = vcmask 130048
        %v769 = vsel %vm768, %v760, -inf
        %770 = vmax.xlane.f32.xlu0 %v769
        %v771 = vpop.xlane.xlu0 %770
        %v772 = vsel %vm768, %v761, -inf
        %773 = vmax.xlane.f32.xlu0 %v772
        %v774 = vpop.xlane.xlu0 %773
        %vm775 = vcmp.eq.f32.partialorder %v760, %v771
        %vm776 = vcmp.eq.f32.partialorder %v761, %v774
        %v777 = vsel %vm775, %v766, 1073741824
        %v778 = vsel %vm776, %v767, 1073741824
        %v779 = vsel %vm768, %v777, 2147483647
        %v780 = vand.u32 %v779, 65535
        %v781 = vshra.s32 %v779, 16
        %v782 = vcvt.s32.f32 %v780
        %v783 = vcvt.s32.f32 %v781
        %784 = vmin.xlane.f32.xlu0 %v783
        %v785 = vpop.xlane.xlu0 %784
        %vm786 = vcmp.eq.f32.partialorder %v783, %v785
        %v787 = vsel %vm786, %v782, inf
        %788 = vmin.xlane.f32.xlu0 %v787
        %v789 = vpop.xlane.xlu0 %788
        %v790 = vcvt.f32.s32 %v789
        %v791 = vcvt.f32.s32 %v785
        %v792 = vshll.u32 %v791, 16
        %v793 = vadd.s32 %v792, %v790
        %v794 = vsel %vm768, %v778, 2147483647
        %v795 = vand.u32 %v794, 65535
        %v796 = vshra.s32 %v794, 16
        %v797 = vcvt.s32.f32 %v795
        %v798 = vcvt.s32.f32 %v796
        %799 = vmin.xlane.f32.xlu0 %v798
        %v800 = vpop.xlane.xlu0 %799
        %vm801 = vcmp.eq.f32.partialorder %v798, %v800
        %v802 = vsel %vm801, %v797, inf
        %803 = vmin.xlane.f32.xlu0 %v802
        %v804 = vpop.xlane.xlu0 %803
        %v805 = vcvt.f32.s32 %v804
        %v806 = vcvt.f32.s32 %v800
        %v807 = vshll.u32 %v806, 16
        %v808 = vadd.s32 %v807, %v805
        %vm809 = vcmp.eq.s32.totalorder %v766, %v793
        %vm810 = vcmp.eq.s32.totalorder %v767, %v808
        %v811 = vsel %vm809, -inf, %v760
        %v812 = vsel %vm810, -inf, %v761
        %v813 = vsel %vm768, %v811, -inf
        %814 = vmax.xlane.f32.xlu0 %v813
        %v815 = vpop.xlane.xlu0 %814
        %v816 = vsel %vm768, %v812, -inf
        %817 = vmax.xlane.f32.xlu0 %v816
        %v818 = vpop.xlane.xlu0 %817
        %vm819 = vcmp.eq.f32.partialorder %v811, %v815
        %vm820 = vcmp.eq.f32.partialorder %v812, %v818
        %v821 = vsel %vm819, %v766, 1073741824
        %v822 = vsel %vm820, %v767, 1073741824
        %v823 = vsel %vm768, %v821, 2147483647
        %v824 = vand.u32 %v823, 65535
        %v825 = vshra.s32 %v823, 16
        %v826 = vcvt.s32.f32 %v824
        %v827 = vcvt.s32.f32 %v825
        %828 = vmin.xlane.f32.xlu0 %v827
        %v829 = vpop.xlane.xlu0 %828
        %vm830 = vcmp.eq.f32.partialorder %v827, %v829
        %v831 = vsel %vm830, %v826, inf
        %832 = vmin.xlane.f32.xlu0 %v831
        %v833 = vpop.xlane.xlu0 %832
        %v834 = vcvt.f32.s32 %v833
        %v835 = vcvt.f32.s32 %v829
        %v836 = vshll.u32 %v835, 16
        %v837 = vadd.s32 %v836, %v834
        %v838 = vsel %vm768, %v822, 2147483647
        %v839 = vand.u32 %v838, 65535
        %v840 = vshra.s32 %v838, 16
        %v841 = vcvt.s32.f32 %v839
        %v842 = vcvt.s32.f32 %v840
        %843 = vmin.xlane.f32.xlu0 %v842
        %v844 = vpop.xlane.xlu0 %843
        %vm845 = vcmp.eq.f32.partialorder %v842, %v844
        %v846 = vsel %vm845, %v841, inf
        %847 = vmin.xlane.f32.xlu0 %v846
        %v848 = vpop.xlane.xlu0 %847
        %v849 = vcvt.f32.s32 %v848
        %v850 = vcvt.f32.s32 %v844
        %v851 = vshll.u32 %v850, 16
        %v852 = vadd.s32 %v851, %v849
        %vm853 = vcmp.eq.s32.totalorder %v766, %v837
        %vm854 = vcmp.eq.s32.totalorder %v767, %v852
        %v855 = vsel %vm853, -inf, %v811
        %v856 = vsel %vm854, -inf, %v812
        %v857 = vsel %vm768, %v855, -inf
        %858 = vmax.xlane.f32.xlu0 %v857
        %v859 = vpop.xlane.xlu0 %858
        %v860 = vsel %vm768, %v856, -inf
        %861 = vmax.xlane.f32.xlu0 %v860
        %v862 = vpop.xlane.xlu0 %861
        %vm863 = vcmp.eq.f32.partialorder %v855, %v859
        %vm864 = vcmp.eq.f32.partialorder %v856, %v862
        %v865 = vsel %vm863, %v766, 1073741824
        %v866 = vsel %vm864, %v767, 1073741824
        %v867 = vsel %vm768, %v865, 2147483647
        %v868 = vand.u32 %v867, 65535
        %v869 = vshra.s32 %v867, 16
        %v870 = vcvt.s32.f32 %v868
        %v871 = vcvt.s32.f32 %v869
        %872 = vmin.xlane.f32.xlu0 %v871
        %v873 = vpop.xlane.xlu0 %872
        %vm874 = vcmp.eq.f32.partialorder %v871, %v873
        %v875 = vsel %vm874, %v870, inf
        %876 = vmin.xlane.f32.xlu0 %v875
        %v877 = vpop.xlane.xlu0 %876
        %v878 = vcvt.f32.s32 %v877
        %v879 = vcvt.f32.s32 %v873
        %v880 = vshll.u32 %v879, 16
        %v881 = vadd.s32 %v880, %v878
        %v882 = vsel %vm768, %v866, 2147483647
        %v883 = vand.u32 %v882, 65535
        %v884 = vshra.s32 %v882, 16
        %v885 = vcvt.s32.f32 %v883
        %v886 = vcvt.s32.f32 %v884
        %887 = vmin.xlane.f32.xlu0 %v886
        %v888 = vpop.xlane.xlu0 %887
        %vm889 = vcmp.eq.f32.partialorder %v886, %v888
        %v890 = vsel %vm889, %v885, inf
        %891 = vmin.xlane.f32.xlu0 %v890
        %v892 = vpop.xlane.xlu0 %891
        %v893 = vcvt.f32.s32 %v892
        %v894 = vcvt.f32.s32 %v888
        %v895 = vshll.u32 %v894, 16
        %v896 = vadd.s32 %v895, %v893
        %vm897 = vcmp.eq.s32.totalorder %v766, %v881
        %vm898 = vcmp.eq.s32.totalorder %v767, %v896
        %v899 = vsel %vm897, -inf, %v855
        %v900 = vsel %vm898, -inf, %v856
        %v901 = vsel %vm768, %v899, -inf
        %902 = vmax.xlane.f32.xlu0 %v901
        %v903 = vpop.xlane.xlu0 %902
        %v904 = vsel %vm768, %v900, -inf
        %905 = vmax.xlane.f32.xlu0 %v904
        %v906 = vpop.xlane.xlu0 %905
        %vm907 = vcmp.eq.f32.partialorder %v899, %v903
        %vm908 = vcmp.eq.f32.partialorder %v900, %v906
        %v909 = vsel %vm907, %v766, 1073741824
        %v910 = vsel %vm908, %v767, 1073741824
        %v911 = vsel %vm768, %v909, 2147483647
        %v912 = vand.u32 %v911, 65535
        %v913 = vshra.s32 %v911, 16
        %v914 = vcvt.s32.f32 %v912
        %v915 = vcvt.s32.f32 %v913
        %916 = vmin.xlane.f32.xlu0 %v915
        %v917 = vpop.xlane.xlu0 %916
        %vm918 = vcmp.eq.f32.partialorder %v915, %v917
        %v919 = vsel %vm918, %v914, inf
        %920 = vmin.xlane.f32.xlu0 %v919
        %v921 = vpop.xlane.xlu0 %920
        %v922 = vcvt.f32.s32 %v921
        %v923 = vcvt.f32.s32 %v917
        %v924 = vshll.u32 %v923, 16
        %v925 = vadd.s32 %v924, %v922
        %v926 = vsel %vm768, %v910, 2147483647
        %v927 = vand.u32 %v926, 65535
        %v928 = vshra.s32 %v926, 16
        %v929 = vcvt.s32.f32 %v927
        %v930 = vcvt.s32.f32 %v928
        %931 = vmin.xlane.f32.xlu0 %v930
        %v932 = vpop.xlane.xlu0 %931
        %vm933 = vcmp.eq.f32.partialorder %v930, %v932
        %v934 = vsel %vm933, %v929, inf
        %935 = vmin.xlane.f32.xlu0 %v934
        %v936 = vpop.xlane.xlu0 %935
        %v937 = vcvt.f32.s32 %v936
        %v938 = vcvt.f32.s32 %v932
        %v939 = vshll.u32 %v938, 16
        %v940 = vadd.s32 %v939, %v937
        %vm941 = vcmp.eq.s32.totalorder %v766, %v925
        %vm942 = vcmp.eq.s32.totalorder %v767, %v940
        %v943 = vsel %vm941, -inf, %v899
        %v944 = vsel %vm942, -inf, %v900
        %v945 = vsel %vm768, %v943, -inf
        %946 = vmax.xlane.f32.xlu0 %v945
        %v947 = vpop.xlane.xlu0 %946
        %v948 = vsel %vm768, %v944, -inf
        %949 = vmax.xlane.f32.xlu0 %v948
        %v950 = vpop.xlane.xlu0 %949
        %vm951 = vcmp.eq.f32.partialorder %v943, %v947
        %vm952 = vcmp.eq.f32.partialorder %v944, %v950
        %v953 = vsel %vm951, %v766, 1073741824
        %v954 = vsel %vm952, %v767, 1073741824
        %v955 = vsel %vm768, %v953, 2147483647
        %v956 = vand.u32 %v955, 65535
        %v957 = vshra.s32 %v955, 16
        %v958 = vcvt.s32.f32 %v956
        %v959 = vcvt.s32.f32 %v957
        %960 = vmin.xlane.f32.xlu0 %v959
        %v961 = vpop.xlane.xlu0 %960
        %vm962 = vcmp.eq.f32.partialorder %v959, %v961
        %v963 = vsel %vm962, %v958, inf
        %964 = vmin.xlane.f32.xlu0 %v963
        %v965 = vpop.xlane.xlu0 %964
        %v966 = vcvt.f32.s32 %v965
        %v967 = vcvt.f32.s32 %v961
        %v968 = vshll.u32 %v967, 16
        %v969 = vadd.s32 %v968, %v966
        %v970 = vsel %vm768, %v954, 2147483647
        %v971 = vand.u32 %v970, 65535
        %v972 = vshra.s32 %v970, 16
        %v973 = vcvt.s32.f32 %v971
        %v974 = vcvt.s32.f32 %v972
        %975 = vmin.xlane.f32.xlu0 %v974
        %v976 = vpop.xlane.xlu0 %975
        %vm977 = vcmp.eq.f32.partialorder %v974, %v976
        %v978 = vsel %vm977, %v973, inf
        %979 = vmin.xlane.f32.xlu0 %v978
        %v980 = vpop.xlane.xlu0 %979
        %v981 = vcvt.f32.s32 %v980
        %v982 = vcvt.f32.s32 %v976
        %v983 = vshll.u32 %v982, 16
        %v984 = vadd.s32 %v983, %v981
        %vm985 = vcmp.eq.s32.totalorder %v766, %v969
        %vm986 = vcmp.eq.s32.totalorder %v767, %v984
        %v987 = vsel %vm985, -inf, %v943
        %v988 = vsel %vm986, -inf, %v944
        %v989 = vsel %vm768, %v987, -inf
        %990 = vmax.xlane.f32.xlu0 %v989
        %v991 = vpop.xlane.xlu0 %990
        %v992 = vsel %vm768, %v988, -inf
        %993 = vmax.xlane.f32.xlu0 %v992
        %v994 = vpop.xlane.xlu0 %993
        %vm995 = vcmp.eq.f32.partialorder %v987, %v991
        %vm996 = vcmp.eq.f32.partialorder %v988, %v994
        %v997 = vsel %vm995, %v766, 1073741824
        %v998 = vsel %vm996, %v767, 1073741824
        %v999 = vsel %vm768, %v997, 2147483647
        %v1000 = vand.u32 %v999, 65535
        %v1001 = vshra.s32 %v999, 16
        %v1002 = vcvt.s32.f32 %v1000
        %v1003 = vcvt.s32.f32 %v1001
        %1004 = vmin.xlane.f32.xlu0 %v1003
        %v1005 = vpop.xlane.xlu0 %1004
        %vm1006 = vcmp.eq.f32.partialorder %v1003, %v1005
        %v1007 = vsel %vm1006, %v1002, inf
        %1008 = vmin.xlane.f32.xlu0 %v1007
        %v1009 = vpop.xlane.xlu0 %1008
        %v1010 = vcvt.f32.s32 %v1009
        %v1011 = vcvt.f32.s32 %v1005
        %v1012 = vshll.u32 %v1011, 16
        %v1013 = vadd.s32 %v1012, %v1010
        %v1014 = vsel %vm768, %v998, 2147483647
        %v1015 = vand.u32 %v1014, 65535
        %v1016 = vshra.s32 %v1014, 16
        %v1017 = vcvt.s32.f32 %v1015
        %v1018 = vcvt.s32.f32 %v1016
        %1019 = vmin.xlane.f32.xlu0 %v1018
        %v1020 = vpop.xlane.xlu0 %1019
        %vm1021 = vcmp.eq.f32.partialorder %v1018, %v1020
        %v1022 = vsel %vm1021, %v1017, inf
        %1023 = vmin.xlane.f32.xlu0 %v1022
        %v1024 = vpop.xlane.xlu0 %1023
        %v1025 = vcvt.f32.s32 %v1024
        %v1026 = vcvt.f32.s32 %v1020
        %v1027 = vshll.u32 %v1026, 16
        %v1028 = vadd.s32 %v1027, %v1025
        %vm1029 = vcmp.eq.s32.totalorder %v766, %v1013
        %vm1030 = vcmp.eq.s32.totalorder %v767, %v1028
        %v1031 = vsel %vm1029, -inf, %v987
        %v1032 = vsel %vm1030, -inf, %v988
        %v1033 = vsel %vm768, %v1031, -inf
        %1034 = vmax.xlane.f32.xlu0 %v1033
        %v1035 = vpop.xlane.xlu0 %1034
        %v1036 = vsel %vm768, %v1032, -inf
        %1037 = vmax.xlane.f32.xlu0 %v1036
        %v1038 = vpop.xlane.xlu0 %1037
        %vm1039 = vcmp.eq.f32.partialorder %v1031, %v1035
        %vm1040 = vcmp.eq.f32.partialorder %v1032, %v1038
        %v1041 = vsel %vm1039, %v766, 1073741824
        %v1042 = vsel %vm1040, %v767, 1073741824
        %v1043 = vsel %vm768, %v1041, 2147483647
        %v1044 = vand.u32 %v1043, 65535
        %v1045 = vshra.s32 %v1043, 16
        %v1046 = vcvt.s32.f32 %v1044
        %v1047 = vcvt.s32.f32 %v1045
        %1048 = vmin.xlane.f32.xlu0 %v1047
        %v1049 = vpop.xlane.xlu0 %1048
        %vm1050 = vcmp.eq.f32.partialorder %v1047, %v1049
        %v1051 = vsel %vm1050, %v1046, inf
        %1052 = vmin.xlane.f32.xlu0 %v1051
        %v1053 = vpop.xlane.xlu0 %1052
        %v1054 = vcvt.f32.s32 %v1053
        %v1055 = vcvt.f32.s32 %v1049
        %v1056 = vshll.u32 %v1055, 16
        %v1057 = vadd.s32 %v1056, %v1054
        %v1058 = vsel %vm768, %v1042, 2147483647
        %v1059 = vand.u32 %v1058, 65535
        %v1060 = vshra.s32 %v1058, 16
        %v1061 = vcvt.s32.f32 %v1059
        %v1062 = vcvt.s32.f32 %v1060
        %1063 = vmin.xlane.f32.xlu0 %v1062
        %v1064 = vpop.xlane.xlu0 %1063
        %vm1065 = vcmp.eq.f32.partialorder %v1062, %v1064
        %v1066 = vsel %vm1065, %v1061, inf
        %1067 = vmin.xlane.f32.xlu0 %v1066
        %v1068 = vpop.xlane.xlu0 %1067
        %v1069 = vcvt.f32.s32 %v1068
        %v1070 = vcvt.f32.s32 %v1064
        %v1071 = vshll.u32 %v1070, 16
        %v1072 = vadd.s32 %v1071, %v1069
        %vm1073 = vcmp.eq.s32.totalorder %v766, %v1057
        %vm1074 = vcmp.eq.s32.totalorder %v767, %v1072
        %v1075 = vsel %vm1073, -inf, %v1031
        %v1076 = vsel %vm1074, -inf, %v1032
        %v1077 = vsel %vm768, %v1075, -inf
        %1078 = vmax.xlane.f32.xlu0 %v1077
        %v1079 = vpop.xlane.xlu0 %1078
        %v1080 = vsel %vm768, %v1076, -inf
        %1081 = vmax.xlane.f32.xlu0 %v1080
        %v1082 = vpop.xlane.xlu0 %1081
        %vm1083 = vcmp.eq.f32.partialorder %v1075, %v1079
        %vm1084 = vcmp.eq.f32.partialorder %v1076, %v1082
        %v1085 = vsel %vm1083, %v766, 1073741824
        %v1086 = vsel %vm1084, %v767, 1073741824
        %v1087 = vsel %vm768, %v1085, 2147483647
        %v1088 = vand.u32 %v1087, 65535
        %v1089 = vshra.s32 %v1087, 16
        %v1090 = vcvt.s32.f32 %v1088
        %v1091 = vcvt.s32.f32 %v1089
        %1092 = vmin.xlane.f32.xlu0 %v1091
        %v1093 = vpop.xlane.xlu0 %1092
        %vm1094 = vcmp.eq.f32.partialorder %v1091, %v1093
        %v1095 = vsel %vm1094, %v1090, inf
        %1096 = vmin.xlane.f32.xlu0 %v1095
        %v1097 = vpop.xlane.xlu0 %1096
        %v1098 = vcvt.f32.s32 %v1097
        %v1099 = vcvt.f32.s32 %v1093
        %v1100 = vshll.u32 %v1099, 16
        %v1101 = vadd.s32 %v1100, %v1098
        %v1102 = vsel %vm768, %v1086, 2147483647
        %v1103 = vand.u32 %v1102, 65535
        %v1104 = vshra.s32 %v1102, 16
        %v1105 = vcvt.s32.f32 %v1103
        %v1106 = vcvt.s32.f32 %v1104
        %1107 = vmin.xlane.f32.xlu0 %v1106
        %v1108 = vpop.xlane.xlu0 %1107
        %vm1109 = vcmp.eq.f32.partialorder %v1106, %v1108
        %v1110 = vsel %vm1109, %v1105, inf
        %1111 = vmin.xlane.f32.xlu0 %v1110
        %v1112 = vpop.xlane.xlu0 %1111
        %v1113 = vcvt.f32.s32 %v1112
        %v1114 = vcvt.f32.s32 %v1108
        %v1115 = vshll.u32 %v1114, 16
        %v1116 = vadd.s32 %v1115, %v1113
        %v1117 = vsel %vm714, %v771, %v815
        %v1118 = vsel %vm714, %v774, %v818
        %v1119 = vsel %vm717, %v1117, %v859
        %v1120 = vsel %vm717, %v1118, %v862
        %v1121 = vsel %vm720, %v1119, %v903
        %v1122 = vsel %vm720, %v1120, %v906
        %v1123 = vsel %vm723, %v1121, %v947
        %v1124 = vsel %vm723, %v1122, %v950
        %v1125 = vsel %vm726, %v1123, %v991
        %v1126 = vsel %vm726, %v1124, %v994
        %v1127 = vsel %vm729, %v1125, %v1035
        %v1128 = vsel %vm729, %v1126, %v1038
        %v1129 = vsel %vm732, %v1127, %v1079
        %v1130 = vsel %vm732, %v1128, %v1082
        %v1131 = vsel %vm714, %v793, %v837
        %v1132 = vsel %vm714, %v808, %v852
        %v1133 = vsel %vm717, %v1131, %v881
        %v1134 = vsel %vm717, %v1132, %v896
        %v1135 = vsel %vm720, %v1133, %v925
        %v1136 = vsel %vm720, %v1134, %v940
        %v1137 = vsel %vm723, %v1135, %v969
        %v1138 = vsel %vm723, %v1136, %v984
        %v1139 = vsel %vm726, %v1137, %v1013
        %v1140 = vsel %vm726, %v1138, %v1028
        %v1141 = vsel %vm729, %v1139, %v1057
        %v1142 = vsel %vm729, %v1140, %v1072
        %v1143 = vsel %vm732, %v1141, %v1101
        %v1144 = vsel %vm732, %v1142, %v1116
        %1145 = vst.msk [vmem:[#allocation2] sm:$0xff] %vm759, %v1129
        %1146 = vst.msk [vmem:[#allocation2 + $0x8] sm:$0xff] %vm759, %v1130
        %1147 = vst.msk [vmem:[#allocation3] sm:$0xff] %vm759, %v1143
        %1148 = vst.msk [vmem:[#allocation3 + $0x8] sm:$0xff] %vm759, %v1144
        %p1149 = scmp.eq.s32.totalorder %s26, 1
        // Predicated region
        $region41: #{tpu_custom_call.1} parent=27 // pred_check
          %p1150 = pneg %p1149
        $region42: #{tpu_custom_call.1} parent=27 // pred_check_branch
          %1152 = sbr.rel (%p1150) target = $region44
        $region43: #{tpu_custom_call.1} parent=27 // pred_region
          %1153 = vst.msk [vmem:[%s250] sm:$0xff] %vm759, %v1129
          %1154 = vst.msk [vmem:[%s250 + $0x8] sm:$0xff] %vm759, %v1130
          %1155 = vst.msk [vmem:[%s256] sm:$0xff] %vm759, %v1143
          %1156 = vst.msk [vmem:[%s256 + $0x8] sm:$0xff] %vm759, %v1144
        $region44: #{tpu_custom_call.1} parent=27 // pred_fallthru
          _
        %s1157 = smul.u32 2, %s25
        %p1158 = scmp.lt.s32.totalorder %s1157, 3
        %s1159 = scalar_select %p1158, %s1157, 3
        %s1160 = smul.addr %s1159, 8
        %s1161 = scalar_lea.vmem %s2, %s1160
        %s1162 = smul.u32 2, %s25
        %p1163 = scmp.lt.s32.totalorder %s1162, 3
        %s1164 = scalar_select %p1163, %s1162, 3
        %s1165 = smul.addr %s1164, 8
        %s1166 = scalar_lea.vmem %s3, %s1165
        // Predicated region
        $region45: #{tpu_custom_call.1} parent=27 // pred_check
          %p1167 = pneg %p103
        $region46: #{tpu_custom_call.1} parent=27 // pred_check_branch
          %1169 = sbr.rel (%p1167) target = $region48
        $region47: #{tpu_custom_call.1} parent=27 // pred_region
          %s1170 = smul.u32 2, %s25
        $region48: #{tpu_custom_call.1} parent=27 // pred_fallthru
          _
        // Predicated region
        $region49: #{tpu_custom_call.1} parent=27 // pred_check
          %p1171 = pneg %p129
        $region50: #{tpu_custom_call.1} parent=27 // pred_check_branch
          %1173 = sbr.rel (%p1171) target = $region52
        $region51: #{tpu_custom_call.1} parent=27 // pred_region
          %s1174 = smul.u32 2, %s25
        $region52: #{tpu_custom_call.1} parent=27 // pred_fallthru
          _
      $region28: #{tpu_custom_call.1} parent=5 // pred_fallthru
        _
      %p1175 = scmp.le.s32.totalorder 2, %s16
      // Predicated region
      $region53: #{tpu_custom_call.1} parent=5 // pred_check
        %p1176 = pneg %p1175
      $region54: #{tpu_custom_call.1} parent=5 // pred_check_branch
        %1178 = sbr.rel (%p1176) target = $region56
      $region55: #{tpu_custom_call.1} parent=5 // pred_region
        %s1179 = ssub.s32 %s16, 2
        // Predicated region
        $region57: #{tpu_custom_call.1} parent=55 // pred_check
          %p1180 = pneg %p109
        $region58: #{tpu_custom_call.1} parent=55 // pred_check_branch
          %1182 = sbr.rel (%p1180) target = $region60
        $region59: #{tpu_custom_call.1} parent=55 // pred_region
          %s1183 = smul.u32 2, %s27
          %p1184 = scmp.lt.s32.totalorder %s1183, 3
          %s1185 = scalar_select %p1184, %s1183, 3
          %s1186 = smul.addr %s1185, 8
          %s1187 = scalar_lea.vmem %s2, %s1186
        $region60: #{tpu_custom_call.1} parent=55 // pred_fallthru
          _
        // Predicated region
        $region61: #{tpu_custom_call.1} parent=55 // pred_check
          %p1188 = pneg %p135
        $region62: #{tpu_custom_call.1} parent=55 // pred_check_branch
          %1190 = sbr.rel (%p1188) target = $region64
        $region63: #{tpu_custom_call.1} parent=55 // pred_region
          %s1191 = smul.u32 2, %s27
          %p1192 = scmp.lt.s32.totalorder %s1191, 3
          %s1193 = scalar_select %p1192, %s1191, 3
          %s1194 = smul.addr %s1193, 8
          %s1195 = scalar_lea.vmem %s3, %s1194
        $region64: #{tpu_custom_call.1} parent=55 // pred_fallthru
          _
      $region56: #{tpu_custom_call.1} parent=5 // pred_fallthru
        _
    $region6: #{tpu_custom_call.1} parent=1 // loop_footer
      %s20 = sadd.s32 1, %s16
    $region7: #{tpu_custom_call.1} parent=1 // loop_footer_branch
      %15 = sbr.rel target = $region3
    $region8: #{tpu_custom_call.1} parent=1 // loop_exit
      _
    %1196 = vsyncpa [#allocation5], 1
    %s1197 = scalar_lea.sflag [#allocation5], 1
    %1198 = vsyncpa %s1197, 1
    %1199 = vsyncpa [#allocation7], 1
    %s1200 = scalar_lea.sflag [#allocation7], 1
    %1201 = vsyncpa %s1200, 1

</llo_original>
